<compile_context>
chip_gen: v6e
topology: v6e:2x2x1
jax: 0.10.0
libtpu: 0.0.40
codegen_flags: <defaults>
</compile_context>

<pallas_src>
import jax
import jax.numpy as jnp
from jax.experimental import pallas as pl
from jax.experimental.pallas import tpu as pltpu

# Logical layer widths (PyTorch Critic).
H_A, H_S1, H_S2, H_C, H_O1 = 32, 84, 256, 400, 200
# Lane-padded widths (multiples of 128).
P_A, P_S1, P_S2, P_C, P_O1 = 128, 128, 256, 512, 256


def _round_up(x, m):
    return (x + m - 1) // m * m


def _leaky(x, slope=0.1):
    return jnp.where(x > 0, x, slope * x)


def critic_kernel(xin_ref,                       # [tb, Kin_pad]      f32  (concat(state, action), zero-padded)
                  w1_ref, b1_ref,                # [Kin_pad, P_S1+P_A] bf16 / [1, P_S1+P_A] f32  (block-diag merged)
                  w2s_ref, b2s_ref,              # [P_S1, P_S2] bf16 / [1, P_S2] f32
                  wc_s_ref, wc_a_ref, bc_ref,    # [P_S2, P_C], [P_A, P_C] bf16 / [1, P_C] f32
                  w3_ref, b3_ref,                # [P_C, P_O1] bf16 / [1, P_O1] f32
                  w4_ref, b4_ref,                # [1, P_O1] f32 / [1, 1] f32
                  out_ref):                      # [tb, 1] f32
    f32 = jnp.float32
    bf16 = jnp.bfloat16

    x_in = xin_ref[...].astype(bf16)

    # Merged first layer (block-diagonal): [state@W1s | action@W1a], then shared leaky.
    y1 = jnp.dot(x_in, w1_ref[...], preferred_element_type=f32) + b1_ref[...]
    y1 = _leaky(y1)
    xs1 = y1[:, :P_S1].astype(bf16)     # lane-aligned slice
    xa = y1[:, P_S1:].astype(bf16)

    # State branch, second layer: 84(pad 128) -> 256.
    xs2 = _leaky(jnp.dot(xs1, w2s_ref[...], preferred_element_type=f32) + b2s_ref[...])

    # concat(xs2, xa) @ Wc  ==  xs2 @ Wc_s + xa @ Wc_a  (concat-free).
    h = (jnp.dot(xs2.astype(bf16), wc_s_ref[...], preferred_element_type=f32)
         + jnp.dot(xa, wc_a_ref[...], preferred_element_type=f32)
         + bc_ref[...])
    h = _leaky(h)

    # 400(pad 512) -> 200(pad 256).
    h3 = _leaky(jnp.dot(h.astype(bf16), w3_ref[...], preferred_element_type=f32) + b3_ref[...])

    # Final 200 -> 1 layer as VPU multiply + lane reduction (no MXU pass).
    out_ref[...] = jnp.sum(h3 * w4_ref[...], axis=-1, keepdims=True) + b4_ref[...]


def critic_forward(state, action, params, *, tile_b=256):
    """Full Critic forward in one batch-gridded Pallas call."""
    B = state.shape[0]
    s_dim = state.shape[1]
    a_dim = action.shape[1]
    kin_pad = params["w1"].shape[0]

    # Batch tile: multiple of 256 (v6e/v7x MXU M-width) when the batch is big
    # enough, otherwise just the sublane-rounded batch.
    tb = min(tile_b, _round_up(B, 8))
    Bp = _round_up(B, tb)

    # Concatenate state/action and zero-pad (batch to Bp, features to kin_pad).
    x_in = jnp.zeros((Bp, kin_pad), jnp.float32)
    x_in = x_in.at[:B, :s_dim].set(state)
    x_in = x_in.at[:B, s_dim:s_dim + a_dim].set(action)

    row_map = lambda i: (i, 0)
    const_map = lambda i: (0, 0)

    def wspec(arr):
        return pl.BlockSpec(arr.shape, const_map)   # whole weight, VMEM-resident

    weight_keys = ("w1", "b1", "w2s", "b2s", "wc_s", "wc_a", "bc", "w3", "b3", "w4", "b4")
    in_specs = [pl.BlockSpec((tb, kin_pad), row_map)] + [wspec(params[k]) for k in weight_keys]

    out = pl.pallas_call(
        critic_kernel,
        grid=(Bp // tb,),
        in_specs=in_specs,
        out_specs=pl.BlockSpec((tb, 1), row_map),
        out_shape=jax.ShapeDtypeStruct((Bp, 1), jnp.float32),
        compiler_params=pltpu.CompilerParams(
            dimension_semantics=("parallel",),
            vmem_limit_bytes=32 * 1024 * 1024,   # explicit; safe on v5e/v6e/v7x
        ),
    )(x_in, *(params[k] for k in weight_keys))
    return out[:B]


def init_raw_params(key, state_size, action_size):
    """Unpadded f32 parameters (PyTorch nn.Linear-style uniform init)."""
    def linear(k, fan_in, fan_out):
        kw, kb = jax.random.split(k)
        bound = 1.0 / jnp.sqrt(fan_in)
        w = jax.random.uniform(kw, (fan_in, fan_out), jnp.float32, -bound, bound)
        b = jax.random.uniform(kb, (fan_out,), jnp.float32, -bound, bound)
        return w, b

    keys = jax.random.split(key, 6)
    raw = {}
    raw["w1a"], raw["b1a"] = linear(keys[0], action_size, H_A)     # h1_a
    raw["w1s"], raw["b1s"] = linear(keys[1], state_size, H_S1)     # h1_s_1
    raw["w2s"], raw["b2s"] = linear(keys[2], H_S1, H_S2)           # h1_s_2
    raw["wc"],  raw["bc"]  = linear(keys[3], H_S2 + H_A, H_C)      # h2_c
    raw["w3"],  raw["b3"]  = linear(keys[4], H_C, H_O1)            # h2_out_1
    raw["w4"],  raw["b4"]  = linear(keys[5], H_O1, 1)              # h2_out_2
    return raw


def pack_params(raw, state_size, action_size):
    """Zero-pad to lane-aligned shapes, merge the two first layers, cast matmul weights to bf16."""
    kin = state_size + action_size
    kin_pad = _round_up(kin, 8)
    bf16 = jnp.bfloat16

    def pad2(w, rows, cols):
        return jnp.zeros((rows, cols), jnp.float32).at[:w.shape[0], :w.shape[1]].set(w)

    # Block-diagonal merged first-layer weight: [state | action] -> [xs1_pad | xa_pad].
    w1 = jnp.zeros((kin_pad, P_S1 + P_A), jnp.float32)
    w1 = w1.at[:state_size, :H_S1].set(raw["w1s"])
    w1 = w1.at[state_size:kin, P_S1:P_S1 + H_A].set(raw["w1a"])
    b1 = jnp.zeros((1, P_S1 + P_A), jnp.float32)
    b1 = b1.at[0, :H_S1].set(raw["b1s"])
    b1 = b1.at[0, P_S1:P_S1 + H_A].set(raw["b1a"])

    w2s = pad2(raw["w2s"], P_S1, P_S2)
    b2s = jnp.zeros((1, P_S2), jnp.float32).at[0, :H_S2].set(raw["b2s"])

    wc_s = pad2(raw["wc"][:H_S2, :], P_S2, P_C)
    wc_a = pad2(raw["wc"][H_S2:, :], P_A, P_C)
    bc = jnp.zeros((1, P_C), jnp.float32).at[0, :H_C].set(raw["bc"])

    w3 = pad2(raw["w3"], P_C, P_O1)
    b3 = jnp.zeros((1, P_O1), jnp.float32).at[0, :H_O1].set(raw["b3"])

    w4 = jnp.zeros((1, P_O1), jnp.float32).at[0, :H_O1].set(raw["w4"][:, 0])
    b4 = raw["b4"].reshape(1, 1)

    return {
        "w1": w1.astype(bf16), "b1": b1,
        "w2s": w2s.astype(bf16), "b2s": b2s,
        "wc_s": wc_s.astype(bf16), "wc_a": wc_a.astype(bf16), "bc": bc,
        "w3": w3.astype(bf16), "b3": b3,
        "w4": w4, "b4": b4,       # final layer stays f32 (VPU/XLU reduction)
    }


def critic_reference(state, action, raw):
    """Pure-JAX f32 reference of the PyTorch forward, for validation."""
    act = lambda x: jnp.where(x > 0, x, 0.1 * x)
    xs = act(state @ raw["w1s"] + raw["b1s"])
    xs = act(xs @ raw["w2s"] + raw["b2s"])
    xa = act(action @ raw["w1a"] + raw["b1a"])
    x = act(jnp.concatenate([xs, xa], axis=1) @ raw["wc"] + raw["bc"])
    x = act(x @ raw["w3"] + raw["b3"])
    return x @ raw["w4"] + raw["b4"]


if __name__ == "__main__":
    key = jax.random.PRNGKey(0)
    k_param, k_state, k_action = jax.random.split(key, 3)

    batch = 8
    state_size = 24   # e.g. Tennis env observation size
    action_size = 4

    raw = init_raw_params(k_param, state_size, action_size)
    params = pack_params(raw, state_size, action_size)

    state = jax.random.normal(k_state, (batch, state_size), jnp.float32)
    action = jax.random.normal(k_action, (batch, action_size), jnp.float32)

    value = critic_forward(state, action, params)
    value = jax.block_until_ready(value)

    ref = critic_reference(state, action, raw)
    assert value.shape == (batch, 1)
    # bf16 matmul weights vs f32 reference -> loose tolerance.
    assert jnp.allclose(value, ref, atol=5e-2, rtol=5e-2), "Pallas kernel mismatch vs reference"

    print("KERNEL_OK")
</pallas_src>

<mosaic_0001>
module attributes {stable_mosaic.version = 11 : i64} {
  func.func @critic_kernel(%arg0: i32, %arg1: memref<8x32xf32, #tpu.memory_space<vmem>>, %arg2: memref<32x256xbf16, #tpu.memory_space<vmem>>, %arg3: memref<1x256xf32, #tpu.memory_space<vmem>>, %arg4: memref<128x256xbf16, #tpu.memory_space<vmem>>, %arg5: memref<1x256xf32, #tpu.memory_space<vmem>>, %arg6: memref<256x512xbf16, #tpu.memory_space<vmem>>, %arg7: memref<128x512xbf16, #tpu.memory_space<vmem>>, %arg8: memref<1x512xf32, #tpu.memory_space<vmem>>, %arg9: memref<512x256xbf16, #tpu.memory_space<vmem>>, %arg10: memref<1x256xf32, #tpu.memory_space<vmem>>, %arg11: memref<1x256xf32, #tpu.memory_space<vmem>>, %arg12: memref<1x1xf32, #tpu.memory_space<vmem>>, %arg13: memref<8x1xf32, #tpu.memory_space<vmem>>) attributes {dimension_semantics = [#tpu.dimension_semantics<parallel>], iteration_bounds = array<i64: 1>, scalar_prefetch = 0 : i64, scratch_operands = 0 : i64, tpu.core_type = #tpu.core_type<tc>, window_params = [{transform_indices = @transform_0, window_bounds = array<i64: 8, 32>}, {pipeline_mode = #tpu.pipeline_mode<synchronous>, transform_indices = @transform_1, window_bounds = array<i64: 32, 256>}, {pipeline_mode = #tpu.pipeline_mode<synchronous>, transform_indices = @transform_2, window_bounds = array<i64: 1, 256>}, {pipeline_mode = #tpu.pipeline_mode<synchronous>, transform_indices = @transform_3, window_bounds = array<i64: 128, 256>}, {pipeline_mode = #tpu.pipeline_mode<synchronous>, transform_indices = @transform_4, window_bounds = array<i64: 1, 256>}, {pipeline_mode = #tpu.pipeline_mode<synchronous>, transform_indices = @transform_5, window_bounds = array<i64: 256, 512>}, {pipeline_mode = #tpu.pipeline_mode<synchronous>, transform_indices = @transform_6, window_bounds = array<i64: 128, 512>}, {pipeline_mode = #tpu.pipeline_mode<synchronous>, transform_indices = @transform_7, window_bounds = array<i64: 1, 512>}, {pipeline_mode = #tpu.pipeline_mode<synchronous>, transform_indices = @transform_8, window_bounds = array<i64: 512, 256>}, {pipeline_mode = #tpu.pipeline_mode<synchronous>, transform_indices = @transform_9, window_bounds = array<i64: 1, 256>}, {pipeline_mode = #tpu.pipeline_mode<synchronous>, transform_indices = @transform_10, window_bounds = array<i64: 1, 256>}, {pipeline_mode = #tpu.pipeline_mode<synchronous>, transform_indices = @transform_11, window_bounds = array<i64: 1, 1>}, {transform_indices = @transform_12, window_bounds = array<i64: 8, 1>}]} {
    %c0 = arith.constant 0 : index
    %c0_0 = arith.constant 0 : index
    %0 = vector.load %arg1[%c0, %c0_0] : memref<8x32xf32, #tpu.memory_space<vmem>>, vector<8x32xf32>
    %1 = arith.truncf %0 : vector<8x32xf32> to vector<8x32xbf16>
    %c0_1 = arith.constant 0 : index
    %c0_2 = arith.constant 0 : index
    %2 = vector.load %arg2[%c0_1, %c0_2] : memref<32x256xbf16, #tpu.memory_space<vmem>>, vector<32x256xbf16>
    %cst = arith.constant dense<0.000000e+00> : vector<8x256xf32>
    %3 = tpu.matmul %1, %2, %cst {dimension_numbers = #tpu.dot_dimension_numbers<[1], [0], [0], [1], [0, 0, 1, 1], [], []>} : vector<8x32xbf16>, vector<32x256xbf16>, vector<8x256xf32> -> vector<8x256xf32>
    %c0_3 = arith.constant 0 : index
    %c0_4 = arith.constant 0 : index
    %4 = vector.load %arg3[%c0_3, %c0_4] : memref<1x256xf32, #tpu.memory_space<vmem>>, vector<1x256xf32>
    %5 = vector.broadcast %4 : vector<1x256xf32> to vector<8x256xf32>
    %6 = arith.addf %3, %5 : vector<8x256xf32>
    %cst_5 = arith.constant 0.000000e+00 : f32
    %7 = vector.broadcast %cst_5 : f32 to vector<8x256xf32>
    %8 = arith.cmpf ogt, %6, %7 : vector<8x256xf32>
    %cst_6 = arith.constant 1.000000e-01 : f32
    %9 = vector.broadcast %cst_6 : f32 to vector<8x256xf32>
    %10 = arith.mulf %9, %6 : vector<8x256xf32>
    %11 = arith.select %8, %6, %10 : vector<8x256xi1>, vector<8x256xf32>
    %12 = vector.extract_strided_slice %11 {offsets = [0, 0], sizes = [8, 128], strides = [1, 1]} : vector<8x256xf32> to vector<8x128xf32>
    %13 = arith.truncf %12 : vector<8x128xf32> to vector<8x128xbf16>
    %14 = vector.extract_strided_slice %11 {offsets = [0, 128], sizes = [8, 128], strides = [1, 1]} : vector<8x256xf32> to vector<8x128xf32>
    %15 = arith.truncf %14 : vector<8x128xf32> to vector<8x128xbf16>
    %c0_7 = arith.constant 0 : index
    %c0_8 = arith.constant 0 : index
    %16 = vector.load %arg4[%c0_7, %c0_8] : memref<128x256xbf16, #tpu.memory_space<vmem>>, vector<128x256xbf16>
    %cst_9 = arith.constant dense<0.000000e+00> : vector<8x256xf32>
    %17 = tpu.matmul %13, %16, %cst_9 {dimension_numbers = #tpu.dot_dimension_numbers<[1], [0], [0], [1], [0, 0, 1, 1], [], []>} : vector<8x128xbf16>, vector<128x256xbf16>, vector<8x256xf32> -> vector<8x256xf32>
    %c0_10 = arith.constant 0 : index
    %c0_11 = arith.constant 0 : index
    %18 = vector.load %arg5[%c0_10, %c0_11] : memref<1x256xf32, #tpu.memory_space<vmem>>, vector<1x256xf32>
    %19 = vector.broadcast %18 : vector<1x256xf32> to vector<8x256xf32>
    %20 = arith.addf %17, %19 : vector<8x256xf32>
    %cst_12 = arith.constant 0.000000e+00 : f32
    %21 = vector.broadcast %cst_12 : f32 to vector<8x256xf32>
    %22 = arith.cmpf ogt, %20, %21 : vector<8x256xf32>
    %cst_13 = arith.constant 1.000000e-01 : f32
    %23 = vector.broadcast %cst_13 : f32 to vector<8x256xf32>
    %24 = arith.mulf %23, %20 : vector<8x256xf32>
    %25 = arith.select %22, %20, %24 : vector<8x256xi1>, vector<8x256xf32>
    %26 = arith.truncf %25 : vector<8x256xf32> to vector<8x256xbf16>
    %c0_14 = arith.constant 0 : index
    %c0_15 = arith.constant 0 : index
    %27 = vector.load %arg6[%c0_14, %c0_15] : memref<256x512xbf16, #tpu.memory_space<vmem>>, vector<256x512xbf16>
    %cst_16 = arith.constant dense<0.000000e+00> : vector<8x512xf32>
    %28 = tpu.matmul %26, %27, %cst_16 {dimension_numbers = #tpu.dot_dimension_numbers<[1], [0], [0], [1], [0, 0, 1, 1], [], []>} : vector<8x256xbf16>, vector<256x512xbf16>, vector<8x512xf32> -> vector<8x512xf32>
    %c0_17 = arith.constant 0 : index
    %c0_18 = arith.constant 0 : index
    %29 = vector.load %arg7[%c0_17, %c0_18] : memref<128x512xbf16, #tpu.memory_space<vmem>>, vector<128x512xbf16>
    %cst_19 = arith.constant dense<0.000000e+00> : vector<8x512xf32>
    %30 = tpu.matmul %15, %29, %cst_19 {dimension_numbers = #tpu.dot_dimension_numbers<[1], [0], [0], [1], [0, 0, 1, 1], [], []>} : vector<8x128xbf16>, vector<128x512xbf16>, vector<8x512xf32> -> vector<8x512xf32>
    %31 = arith.addf %28, %30 : vector<8x512xf32>
    %c0_20 = arith.constant 0 : index
    %c0_21 = arith.constant 0 : index
    %32 = vector.load %arg8[%c0_20, %c0_21] : memref<1x512xf32, #tpu.memory_space<vmem>>, vector<1x512xf32>
    %33 = vector.broadcast %32 : vector<1x512xf32> to vector<8x512xf32>
    %34 = arith.addf %31, %33 : vector<8x512xf32>
    %cst_22 = arith.constant 0.000000e+00 : f32
    %35 = vector.broadcast %cst_22 : f32 to vector<8x512xf32>
    %36 = arith.cmpf ogt, %34, %35 : vector<8x512xf32>
    %cst_23 = arith.constant 1.000000e-01 : f32
    %37 = vector.broadcast %cst_23 : f32 to vector<8x512xf32>
    %38 = arith.mulf %37, %34 : vector<8x512xf32>
    %39 = arith.select %36, %34, %38 : vector<8x512xi1>, vector<8x512xf32>
    %40 = arith.truncf %39 : vector<8x512xf32> to vector<8x512xbf16>
    %c0_24 = arith.constant 0 : index
    %c0_25 = arith.constant 0 : index
    %41 = vector.load %arg9[%c0_24, %c0_25] : memref<512x256xbf16, #tpu.memory_space<vmem>>, vector<512x256xbf16>
    %cst_26 = arith.constant dense<0.000000e+00> : vector<8x256xf32>
    %42 = tpu.matmul %40, %41, %cst_26 {dimension_numbers = #tpu.dot_dimension_numbers<[1], [0], [0], [1], [0, 0, 1, 1], [], []>} : vector<8x512xbf16>, vector<512x256xbf16>, vector<8x256xf32> -> vector<8x256xf32>
    %c0_27 = arith.constant 0 : index
    %c0_28 = arith.constant 0 : index
    %43 = vector.load %arg10[%c0_27, %c0_28] : memref<1x256xf32, #tpu.memory_space<vmem>>, vector<1x256xf32>
    %44 = vector.broadcast %43 : vector<1x256xf32> to vector<8x256xf32>
    %45 = arith.addf %42, %44 : vector<8x256xf32>
    %cst_29 = arith.constant 0.000000e+00 : f32
    %46 = vector.broadcast %cst_29 : f32 to vector<8x256xf32>
    %47 = arith.cmpf ogt, %45, %46 : vector<8x256xf32>
    %cst_30 = arith.constant 1.000000e-01 : f32
    %48 = vector.broadcast %cst_30 : f32 to vector<8x256xf32>
    %49 = arith.mulf %48, %45 : vector<8x256xf32>
    %50 = arith.select %47, %45, %49 : vector<8x256xi1>, vector<8x256xf32>
    %c0_31 = arith.constant 0 : index
    %c0_32 = arith.constant 0 : index
    %51 = vector.load %arg11[%c0_31, %c0_32] : memref<1x256xf32, #tpu.memory_space<vmem>>, vector<1x256xf32>
    %52 = vector.broadcast %51 : vector<1x256xf32> to vector<8x256xf32>
    %53 = arith.mulf %50, %52 : vector<8x256xf32>
    %cst_33 = arith.constant dense<0.000000e+00> : vector<8xf32>
    %54 = vector.multi_reduction <add>, %53, %cst_33 [1] : vector<8x256xf32> to vector<8xf32>
    %55 = vector.shape_cast %54 : vector<8xf32> to vector<8x1xf32>
    %c0_34 = arith.constant 0 : index
    %c0_35 = arith.constant 0 : index
    %56 = vector.load %arg12[%c0_34, %c0_35] : memref<1x1xf32, #tpu.memory_space<vmem>>, vector<1x1xf32>
    %57 = vector.broadcast %56 : vector<1x1xf32> to vector<8x1xf32>
    %58 = arith.addf %55, %57 : vector<8x1xf32>
    %c0_36 = arith.constant 0 : index
    %c0_37 = arith.constant 0 : index
    %59 = vector.load %arg13[%c0_36, %c0_37] : memref<8x1xf32, #tpu.memory_space<vmem>>, vector<8x1xf32>
    tpu.vector_store %arg13[%c0_36, %c0_37], %58 {strides = array<i32>} : memref<8x1xf32, #tpu.memory_space<vmem>>, vector<8x1xf32>,
    return
  }
  func.func @transform_0(%arg0: i32) -> (i32, i32) {
    %c0_i32 = arith.constant 0 : i32
    %c0_i32_0 = arith.constant 0 : i32
    return %arg0, %c0_i32 : i32, i32
  }
  func.func @transform_1(%arg0: i32) -> (i32, i32) {
    %c0_i32 = arith.constant 0 : i32
    %c0_i32_0 = arith.constant 0 : i32
    %c0_i32_1 = arith.constant 0 : i32
    return %c0_i32, %c0_i32_0 : i32, i32
  }
  func.func @transform_2(%arg0: i32) -> (i32, i32) {
    %c0_i32 = arith.constant 0 : i32
    %c0_i32_0 = arith.constant 0 : i32
    %c0_i32_1 = arith.constant 0 : i32
    return %c0_i32, %c0_i32_0 : i32, i32
  }
  func.func @transform_3(%arg0: i32) -> (i32, i32) {
    %c0_i32 = arith.constant 0 : i32
    %c0_i32_0 = arith.constant 0 : i32
    %c0_i32_1 = arith.constant 0 : i32
    return %c0_i32, %c0_i32_0 : i32, i32
  }
  func.func @transform_4(%arg0: i32) -> (i32, i32) {
    %c0_i32 = arith.constant 0 : i32
    %c0_i32_0 = arith.constant 0 : i32
    %c0_i32_1 = arith.constant 0 : i32
    return %c0_i32, %c0_i32_0 : i32, i32
  }
  func.func @transform_5(%arg0: i32) -> (i32, i32) {
    %c0_i32 = arith.constant 0 : i32
    %c0_i32_0 = arith.constant 0 : i32
    %c0_i32_1 = arith.constant 0 : i32
    return %c0_i32, %c0_i32_0 : i32, i32
  }
  func.func @transform_6(%arg0: i32) -> (i32, i32) {
    %c0_i32 = arith.constant 0 : i32
    %c0_i32_0 = arith.constant 0 : i32
    %c0_i32_1 = arith.constant 0 : i32
    return %c0_i32, %c0_i32_0 : i32, i32
  }
  func.func @transform_7(%arg0: i32) -> (i32, i32) {
    %c0_i32 = arith.constant 0 : i32
    %c0_i32_0 = arith.constant 0 : i32
    %c0_i32_1 = arith.constant 0 : i32
    return %c0_i32, %c0_i32_0 : i32, i32
  }
  func.func @transform_8(%arg0: i32) -> (i32, i32) {
    %c0_i32 = arith.constant 0 : i32
    %c0_i32_0 = arith.constant 0 : i32
    %c0_i32_1 = arith.constant 0 : i32
    return %c0_i32, %c0_i32_0 : i32, i32
  }
  func.func @transform_9(%arg0: i32) -> (i32, i32) {
    %c0_i32 = arith.constant 0 : i32
    %c0_i32_0 = arith.constant 0 : i32
    %c0_i32_1 = arith.constant 0 : i32
    return %c0_i32, %c0_i32_0 : i32, i32
  }
  func.func @transform_10(%arg0: i32) -> (i32, i32) {
    %c0_i32 = arith.constant 0 : i32
    %c0_i32_0 = arith.constant 0 : i32
    %c0_i32_1 = arith.constant 0 : i32
    return %c0_i32, %c0_i32_0 : i32, i32
  }
  func.func @transform_11(%arg0: i32) -> (i32, i32) {
    %c0_i32 = arith.constant 0 : i32
    %c0_i32_0 = arith.constant 0 : i32
    %c0_i32_1 = arith.constant 0 : i32
    return %c0_i32, %c0_i32_0 : i32, i32
  }
  func.func @transform_12(%arg0: i32) -> (i32, i32) {
    %c0_i32 = arith.constant 0 : i32
    %c0_i32_0 = arith.constant 0 : i32
    return %arg0, %c0_i32 : i32, i32
  }
}

</mosaic_0001>

<llo_original>
// kernel: tpu_custom_call.1
$region0: #{tpu_custom_call.1}
  #allocation0 [shape = 'u32[]', space=smem, size = 0x4, offset = 0x4, fixed_abs, tag = 'smem constant byte address 0x4 - core index']
  #allocation1 [shape = 'u32[144,128]{1,0:T(1,128)}', space=vmem, size = 0x12000, scoped, tag = 'internal scratch']
  #allocation2 [shape = 'f32[1,1]{1,0:T(1,128)S(1)}', space=vmem, size = 0x200, scoped, tag = 'scoped memory for tpu_custom_call.1']
  %s0 = inlined_call_operand.hbm [shape: f32[8,32], index: 0, kind: input, shape index: {}]
  %s1 = inlined_call_operand.hbm [shape: bf16[32,256], index: 1, kind: input, shape index: {}]
  %s2 = inlined_call_operand.vmem [shape: f32[1,256], index: 2, kind: input, shape index: {}]
  %s3 = inlined_call_operand.hbm [shape: bf16[128,256], index: 3, kind: input, shape index: {}]
  %s4 = inlined_call_operand.vmem [shape: f32[1,256], index: 4, kind: input, shape index: {}]
  %s5 = inlined_call_operand.hbm [shape: bf16[256,512], index: 5, kind: input, shape index: {}]
  %s6 = inlined_call_operand.hbm [shape: bf16[128,512], index: 6, kind: input, shape index: {}]
  %s7 = inlined_call_operand.vmem [shape: f32[1,512], index: 7, kind: input, shape index: {}]
  %s8 = inlined_call_operand.hbm [shape: bf16[512,256], index: 8, kind: input, shape index: {}]
  %s9 = inlined_call_operand.vmem [shape: f32[1,256], index: 9, kind: input, shape index: {}]
  %s10 = inlined_call_operand.vmem [shape: f32[1,256], index: 10, kind: input, shape index: {}]
  %s11 = inlined_call_operand.<no memory space> [shape: f32[1,1], index: 11, kind: input, shape index: {}]
  %s12 = inlined_call_operand.vmem [shape: f32[8,1], index: 12, kind: output, shape index: {}]
  %s13 = sld [smem:[#allocation0]]
  $region82: #{tpu_custom_call.1} parent=0
    _
  %s15 = ssub.s32 1, %s13
  %s16 = scalar_select 0, %s15, %s13
  %v17 = vstv %s11
  %18 = vst [vmem:[#allocation2] sm:$0x1] %v17
  $region1: #{tpu_custom_call.1} parent=0
    #allocation3 [shape = 'u8[4096]{0}', space=vmem, size = 0x1000, scoped, tag = 'input window, operand 0, single buffered']
    #allocation4 [shape = 's32[1]{0}', space=sflag, size = 0x4, scoped, tag = 'scoped memory for tpu_custom_call.1']
    #allocation5 [shape = 'u8[16384]{0}', space=vmem, size = 0x4000, scoped, tag = 'input window, operand 1, single buffered']
    #allocation6 [shape = 's32[1]{0}', space=sflag, size = 0x4, scoped, tag = 'scoped memory for tpu_custom_call.1']
    #allocation7 [shape = 'u8[65536]{0}', space=vmem, size = 0x10000, scoped, tag = 'input window, operand 3, single buffered']
    #allocation8 [shape = 'u8[262144]{0}', space=vmem, size = 0x40000, scoped, tag = 'input window, operand 5, single buffered']
    #allocation9 [shape = 's32[1]{0}', space=sflag, size = 0x4, scoped, tag = 'scoped memory for tpu_custom_call.1']
    #allocation10 [shape = 'u8[131072]{0}', space=vmem, size = 0x20000, scoped, tag = 'input window, operand 6, single buffered']
    #allocation11 [shape = 'u8[262144]{0}', space=vmem, size = 0x40000, scoped, tag = 'input window, operand 8, single buffered']
    #allocation12 [shape = 's32[1]{0}', space=sflag, size = 0x4, scoped, tag = 'scoped memory for tpu_custom_call.1']
    %19 = vsyncpa [#allocation4], 0
    %20 = vsyncpa [#allocation6], 0
    %21 = vsyncpa [#allocation9], 0
    %22 = vsyncpa [#allocation12], 0
    // Predicated region
    $region2: #{tpu_custom_call.1} parent=1 // pred_check
      _
    $region3: #{tpu_custom_call.1} parent=1 // pred_check_branch
      %24 = sbr.rel (0) target = $region5
    $region4: #{tpu_custom_call.1} parent=1 // pred_region
      %s26 = ssub.s32 128, 128
      %27 = vsyncadd [#allocation4], %s26
      %s29 = sshll.u32 [#allocation3], 4
      %s30 = int_to_ptr.vmem [resolvable:$true] %s29
      %32 = dma.hbm_to_vmem [thread:$0]  %s0, 128, %s30, [#allocation4]
    $region5: #{tpu_custom_call.1} parent=1 // pred_fallthru
      _
    // Predicated region
    $region6: #{tpu_custom_call.1} parent=1 // pred_check
      _
    $region7: #{tpu_custom_call.1} parent=1 // pred_check_branch
      %34 = sbr.rel (0) target = $region9
    $region8: #{tpu_custom_call.1} parent=1 // pred_region
      %s36 = ssub.s32 512, 512
      %37 = vsyncadd [#allocation6], %s36
      %s38 = sshll.u32 [#allocation5], 4
      %s39 = int_to_ptr.vmem [resolvable:$true] %s38
      %44 = dma.hbm_to_vmem [thread:$0]  %s1, 512, %s39, [#allocation6], 128, 128, 8
    $region9: #{tpu_custom_call.1} parent=1 // pred_fallthru
      _
    // Predicated region
    $region10: #{tpu_custom_call.1} parent=1 // pred_check
      _
    $region11: #{tpu_custom_call.1} parent=1 // pred_check_branch
      %46 = sbr.rel (0) target = $region13
    $region12: #{tpu_custom_call.1} parent=1 // pred_region
      _
    $region13: #{tpu_custom_call.1} parent=1 // pred_fallthru
      _
    // Predicated region
    $region14: #{tpu_custom_call.1} parent=1 // pred_check
      _
    $region15: #{tpu_custom_call.1} parent=1 // pred_check_branch
      %48 = sbr.rel (0) target = $region17
    $region16: #{tpu_custom_call.1} parent=1 // pred_region
      %s50 = ssub.s32 2048, 2048
      %51 = vsyncadd [#allocation6], %s50
      %s52 = sshll.u32 [#allocation7], 4
      %s53 = int_to_ptr.vmem [resolvable:$true] %s52
      %58 = dma.hbm_to_vmem [thread:$0]  %s3, 2048, %s53, [#allocation6], 128, 128, 8
    $region17: #{tpu_custom_call.1} parent=1 // pred_fallthru
      _
    // Predicated region
    $region18: #{tpu_custom_call.1} parent=1 // pred_check
      _
    $region19: #{tpu_custom_call.1} parent=1 // pred_check_branch
      %60 = sbr.rel (0) target = $region21
    $region20: #{tpu_custom_call.1} parent=1 // pred_region
      _
    $region21: #{tpu_custom_call.1} parent=1 // pred_fallthru
      _
    // Predicated region
    $region22: #{tpu_custom_call.1} parent=1 // pred_check
      _
    $region23: #{tpu_custom_call.1} parent=1 // pred_check_branch
      %62 = sbr.rel (0) target = $region25
    $region24: #{tpu_custom_call.1} parent=1 // pred_region
      %s64 = ssub.s32 8192, 8192
      %65 = vsyncadd [#allocation9], %s64
      %s66 = sshll.u32 [#allocation8], 4
      %s67 = int_to_ptr.vmem [resolvable:$true] %s66
      %72 = dma.hbm_to_vmem [thread:$0]  %s5, 8192, %s67, [#allocation9], 256, 256, 16
    $region25: #{tpu_custom_call.1} parent=1 // pred_fallthru
      _
    // Predicated region
    $region26: #{tpu_custom_call.1} parent=1 // pred_check
      _
    $region27: #{tpu_custom_call.1} parent=1 // pred_check_branch
      %74 = sbr.rel (0) target = $region29
    $region28: #{tpu_custom_call.1} parent=1 // pred_region
      %s76 = ssub.s32 4096, 4096
      %77 = vsyncadd [#allocation9], %s76
      %s78 = sshll.u32 [#allocation10], 4
      %s79 = int_to_ptr.vmem [resolvable:$true] %s78
      %84 = dma.hbm_to_vmem [thread:$0]  %s6, 4096, %s79, [#allocation9], 256, 256, 16
    $region29: #{tpu_custom_call.1} parent=1 // pred_fallthru
      _
    // Predicated region
    $region30: #{tpu_custom_call.1} parent=1 // pred_check
      _
    $region31: #{tpu_custom_call.1} parent=1 // pred_check_branch
      %86 = sbr.rel (0) target = $region33
    $region32: #{tpu_custom_call.1} parent=1 // pred_region
      _
    $region33: #{tpu_custom_call.1} parent=1 // pred_fallthru
      _
    // Predicated region
    $region34: #{tpu_custom_call.1} parent=1 // pred_check
      _
    $region35: #{tpu_custom_call.1} parent=1 // pred_check_branch
      %88 = sbr.rel (0) target = $region37
    $region36: #{tpu_custom_call.1} parent=1 // pred_region
      %s90 = ssub.s32 8192, 8192
      %91 = vsyncadd [#allocation12], %s90
      %s92 = sshll.u32 [#allocation11], 4
      %s93 = int_to_ptr.vmem [resolvable:$true] %s92
      %98 = dma.hbm_to_vmem [thread:$0]  %s8, 8192, %s93, [#allocation12], 128, 128, 8
    $region37: #{tpu_custom_call.1} parent=1 // pred_fallthru
      _
    // Predicated region
    $region38: #{tpu_custom_call.1} parent=1 // pred_check
      _
    $region39: #{tpu_custom_call.1} parent=1 // pred_check_branch
      %100 = sbr.rel (0) target = $region41
    $region40: #{tpu_custom_call.1} parent=1 // pred_region
      _
    $region41: #{tpu_custom_call.1} parent=1 // pred_fallthru
      _
    // Predicated region
    $region42: #{tpu_custom_call.1} parent=1 // pred_check
      _
    $region43: #{tpu_custom_call.1} parent=1 // pred_check_branch
      %102 = sbr.rel (0) target = $region45
    $region44: #{tpu_custom_call.1} parent=1 // pred_region
      _
    $region45: #{tpu_custom_call.1} parent=1 // pred_fallthru
      _
    // Predicated region
    $region46: #{tpu_custom_call.1} parent=1 // pred_check
      _
    $region47: #{tpu_custom_call.1} parent=1 // pred_check_branch
      %104 = sbr.rel (0) target = $region49
    $region48: #{tpu_custom_call.1} parent=1 // pred_region
      _
    $region49: #{tpu_custom_call.1} parent=1 // pred_fallthru
      _
    // Predicated region
    $region50: #{tpu_custom_call.1} parent=1 // pred_check
      _
    $region51: #{tpu_custom_call.1} parent=1 // pred_check_branch
      %106 = sbr.rel (0) target = $region53
    $region52: #{tpu_custom_call.1} parent=1 // pred_region
      %107 = dma.done [#allocation4], 128
    $region53: #{tpu_custom_call.1} parent=1 // pred_fallthru
      _
    // Predicated region
    $region54: #{tpu_custom_call.1} parent=1 // pred_check
      _
    $region55: #{tpu_custom_call.1} parent=1 // pred_check_branch
      %109 = sbr.rel (0) target = $region57
    $region56: #{tpu_custom_call.1} parent=1 // pred_region
      %110 = dma.done [#allocation6], 512
    $region57: #{tpu_custom_call.1} parent=1 // pred_fallthru
      _
    // Predicated region
    $region58: #{tpu_custom_call.1} parent=1 // pred_check
      _
    $region59: #{tpu_custom_call.1} parent=1 // pred_check_branch
      %112 = sbr.rel (0) target = $region61
    $region60: #{tpu_custom_call.1} parent=1 // pred_region
      %113 = dma.done [#allocation6], 2048
    $region61: #{tpu_custom_call.1} parent=1 // pred_fallthru
      _
    // Predicated region
    $region62: #{tpu_custom_call.1} parent=1 // pred_check
      _
    $region63: #{tpu_custom_call.1} parent=1 // pred_check_branch
      %115 = sbr.rel (0) target = $region65
    $region64: #{tpu_custom_call.1} parent=1 // pred_region
      %116 = dma.done [#allocation9], 8192
    $region65: #{tpu_custom_call.1} parent=1 // pred_fallthru
      _
    // Predicated region
    $region66: #{tpu_custom_call.1} parent=1 // pred_check
      _
    $region67: #{tpu_custom_call.1} parent=1 // pred_check_branch
      %118 = sbr.rel (0) target = $region69
    $region68: #{tpu_custom_call.1} parent=1 // pred_region
      %119 = dma.done [#allocation9], 4096
    $region69: #{tpu_custom_call.1} parent=1 // pred_fallthru
      _
    // Predicated region
    $region70: #{tpu_custom_call.1} parent=1 // pred_check
      _
    $region71: #{tpu_custom_call.1} parent=1 // pred_check_branch
      %121 = sbr.rel (0) target = $region73
    $region72: #{tpu_custom_call.1} parent=1 // pred_region
      %122 = dma.done [#allocation12], 8192
    $region73: #{tpu_custom_call.1} parent=1 // pred_fallthru
      _
    %v124 = vld [vmem:[#allocation3] sm:$0xff]
    %v125 = vpack.c.bf16 %v124, %v124
    %v126 = vld [vmem:[#allocation5] sm:$0xff]
    %v127 = vld [vmem:[#allocation5 + $0x8] sm:$0xff]
    %v128 = vld [vmem:[#allocation5 + $0x10] sm:$0xff]
    %v129 = vld [vmem:[#allocation5 + $0x18] sm:$0xff]
    %v130 = vld [vmem:[%s2] sm:$0x3]
    %v132 = vlaneseq
    %v133 = vshrl.u32 %v132, 7
    %v134 = vsub.s32 0, %v133
    %v135 = vrot.slane %v130, %v134
    %v136 = vlaneseq
    %v137 = vshrl.u32 %v136, 7
    %v138 = vsub.s32 1, %v137
    %v139 = vrot.slane %v130, %v138
    %v146 = vunpack.c.l.b16 %v126
    %v147 = vunpack.c.h.b16 %v126
    %v148 = vunpack.c.l.b16 %v127
    %v149 = vunpack.c.h.b16 %v127
    %v150 = vunpack.c.l.b16 %v128
    %v151 = vunpack.c.h.b16 %v128
    %v152 = vunpack.c.l.b16 %v129
    %v153 = vunpack.c.h.b16 %v129
    %v154 = vpack.c.b16 %v148, %v146
    %v155 = vpack.c.b16 %v149, %v147
    %v156 = vpack.c.b16 %v152, %v150
    %v157 = vpack.c.b16 %v153, %v151
    %vm162 = vcmask 261120
    %v164 = vsel %vm162, %v125, 0
    %166 = vmatprep.subr.bf16.mxu0 0
    %167 = vmatpush1.bf16.msra.mxu0 0
    %168 = vmatprep.subr.bf16.mxu0 0
    %169 = vmatpush1.bf16.msra.mxu0 0
    %170 = vmatprep.subr.bf16.mxu0 0
    %171 = vmatpush1.bf16.msra.mxu0 0
    %172 = vmatprep.subr.bf16.mxu0 0
    %173 = vmatpush1.bf16.msra.mxu0 0
    %174 = vmatprep.subr.bf16.mxu0 0
    %175 = vmatpush1.bf16.msra.mxu0 0
    %176 = vmatprep.subr.bf16.mxu0 0
    %177 = vmatpush1.bf16.msra.mxu0 0
    %178 = vmatprep.subr.bf16.mxu0 %v157
    %179 = vmatpush1.bf16.msra.mxu0 %v156
    %180 = vmatprep.subr.bf16.mxu0 %v155
    %181 = vmatpush1.bf16.msra.mxu0 %v154
    %182 = vmatprep.subr.bf16.mxu0 0
    %183 = vmatpush2.bf16.msra.mxu0 0
    %184 = vmatprep.subr.bf16.mxu0 0
    %185 = vmatpush2.bf16.msra.mxu0 0
    %186 = vmatprep.subr.bf16.mxu0 0
    %187 = vmatpush2.bf16.msra.mxu0 0
    %188 = vmatprep.subr.bf16.mxu0 0
    %189 = vmatpush2.bf16.msra.mxu0 0
    %190 = vmatprep.subr.bf16.mxu0 0
    %191 = vmatpush2.bf16.msra.mxu0 0
    %192 = vmatprep.subr.bf16.mxu0 0
    %193 = vmatpush2.bf16.msra.mxu0 0
    %194 = vmatprep.subr.bf16.mxu0 0
    %195 = vmatpush2.bf16.msra.mxu0 0
    %196 = vmatprep.subr.bf16.mxu0 0
    %197 = vmatpush2.bf16.msra.mxu0 0
    %198 = vmatprep.mubr.bf16.mxu0 0
    %199 = vmatmul.mubr.bf16.gmra.mxu0 %v164
    %v200 = vpop.f32.mrf.mxu0
    %v201 = vadd.f32 %v135, %v200
    %v202 = vpop.f32.mrf.mxu0
    %v203 = vadd.f32 %v139, %v202
    %v204 = vpop.f32.mrf.mxu0
    %v205 = vpop.f32.mrf.mxu0
    %206 = vdwg.mxu0
    %vm207 = vcmp.gt.f32.partialorder %v201, 0.0
    %vm208 = vcmp.gt.f32.partialorder %v203, 0.0
    %v209 = vmul.f32 %v201, 0.1
    %v210 = vmul.f32 %v203, 0.1
    %v211 = vsel %vm207, %v201, %v209
    %v212 = vsel %vm208, %v203, %v210
    %v213 = vpack.c.bf16 %v211, %v211
    %v214 = vpack.c.bf16 %v212, %v212
    %v215 = vld [vmem:[#allocation7] sm:$0xff]
    %v216 = vld [vmem:[#allocation7 + $0x8] sm:$0xff]
    %v217 = vld [vmem:[#allocation7 + $0x10] sm:$0xff]
    %v218 = vld [vmem:[#allocation7 + $0x18] sm:$0xff]
    %v219 = vld [vmem:[#allocation7 + $0x20] sm:$0xff]
    %v220 = vld [vmem:[#allocation7 + $0x28] sm:$0xff]
    %v221 = vld [vmem:[#allocation7 + $0x30] sm:$0xff]
    %v222 = vld [vmem:[#allocation7 + $0x38] sm:$0xff]
    %v223 = vld [vmem:[#allocation7 + $0x40] sm:$0xff]
    %v224 = vld [vmem:[#allocation7 + $0x48] sm:$0xff]
    %v225 = vld [vmem:[#allocation7 + $0x50] sm:$0xff]
    %v226 = vld [vmem:[#allocation7 + $0x58] sm:$0xff]
    %v227 = vld [vmem:[#allocation7 + $0x60] sm:$0xff]
    %v228 = vld [vmem:[#allocation7 + $0x68] sm:$0xff]
    %v229 = vld [vmem:[#allocation7 + $0x70] sm:$0xff]
    %v230 = vld [vmem:[#allocation7 + $0x78] sm:$0xff]
    %v231 = vld [vmem:[%s4] sm:$0x3]
    %v233 = vlaneseq
    %v234 = vshrl.u32 %v233, 7
    %v235 = vsub.s32 0, %v234
    %v236 = vrot.slane %v231, %v235
    %v237 = vlaneseq
    %v238 = vshrl.u32 %v237, 7
    %v239 = vsub.s32 1, %v238
    %v240 = vrot.slane %v231, %v239
    %v259 = vunpack.c.l.b16 %v215
    %v260 = vunpack.c.h.b16 %v215
    %v261 = vunpack.c.l.b16 %v216
    %v262 = vunpack.c.h.b16 %v216
    %v263 = vunpack.c.l.b16 %v217
    %v264 = vunpack.c.h.b16 %v217
    %v265 = vunpack.c.l.b16 %v218
    %v266 = vunpack.c.h.b16 %v218
    %v267 = vunpack.c.l.b16 %v219
    %v268 = vunpack.c.h.b16 %v219
    %v269 = vunpack.c.l.b16 %v220
    %v270 = vunpack.c.h.b16 %v220
    %v271 = vunpack.c.l.b16 %v221
    %v272 = vunpack.c.h.b16 %v221
    %v273 = vunpack.c.l.b16 %v222
    %v274 = vunpack.c.h.b16 %v222
    %v275 = vunpack.c.l.b16 %v223
    %v276 = vunpack.c.h.b16 %v223
    %v277 = vunpack.c.l.b16 %v224
    %v278 = vunpack.c.h.b16 %v224
    %v279 = vunpack.c.l.b16 %v225
    %v280 = vunpack.c.h.b16 %v225
    %v281 = vunpack.c.l.b16 %v226
    %v282 = vunpack.c.h.b16 %v226
    %v283 = vunpack.c.l.b16 %v227
    %v284 = vunpack.c.h.b16 %v227
    %v285 = vunpack.c.l.b16 %v228
    %v286 = vunpack.c.h.b16 %v228
    %v287 = vunpack.c.l.b16 %v229
    %v288 = vunpack.c.h.b16 %v229
    %v289 = vunpack.c.l.b16 %v230
    %v290 = vunpack.c.h.b16 %v230
    %v291 = vpack.c.b16 %v261, %v259
    %v292 = vpack.c.b16 %v262, %v260
    %v293 = vpack.c.b16 %v265, %v263
    %v294 = vpack.c.b16 %v266, %v264
    %v295 = vpack.c.b16 %v269, %v267
    %v296 = vpack.c.b16 %v270, %v268
    %v297 = vpack.c.b16 %v273, %v271
    %v298 = vpack.c.b16 %v274, %v272
    %v299 = vpack.c.b16 %v277, %v275
    %v300 = vpack.c.b16 %v278, %v276
    %v301 = vpack.c.b16 %v281, %v279
    %v302 = vpack.c.b16 %v282, %v280
    %v303 = vpack.c.b16 %v285, %v283
    %v304 = vpack.c.b16 %v286, %v284
    %v305 = vpack.c.b16 %v289, %v287
    %v306 = vpack.c.b16 %v290, %v288
    %323 = vmatprep.subr.bf16.mxu0 %v306
    %324 = vmatpush1.bf16.msra.mxu0 %v305
    %325 = vmatprep.subr.bf16.mxu0 %v304
    %326 = vmatpush1.bf16.msra.mxu0 %v303
    %327 = vmatprep.subr.bf16.mxu0 %v302
    %328 = vmatpush1.bf16.msra.mxu0 %v301
    %329 = vmatprep.subr.bf16.mxu0 %v300
    %330 = vmatpush1.bf16.msra.mxu0 %v299
    %331 = vmatprep.subr.bf16.mxu0 %v298
    %332 = vmatpush1.bf16.msra.mxu0 %v297
    %333 = vmatprep.subr.bf16.mxu0 %v296
    %334 = vmatpush1.bf16.msra.mxu0 %v295
    %335 = vmatprep.subr.bf16.mxu0 %v294
    %336 = vmatpush1.bf16.msra.mxu0 %v293
    %337 = vmatprep.subr.bf16.mxu0 %v292
    %338 = vmatpush1.bf16.msra.mxu0 %v291
    %339 = vmatprep.subr.bf16.mxu0 0
    %340 = vmatpush2.bf16.msra.mxu0 0
    %341 = vmatprep.subr.bf16.mxu0 0
    %342 = vmatpush2.bf16.msra.mxu0 0
    %343 = vmatprep.subr.bf16.mxu0 0
    %344 = vmatpush2.bf16.msra.mxu0 0
    %345 = vmatprep.subr.bf16.mxu0 0
    %346 = vmatpush2.bf16.msra.mxu0 0
    %347 = vmatprep.subr.bf16.mxu0 0
    %348 = vmatpush2.bf16.msra.mxu0 0
    %349 = vmatprep.subr.bf16.mxu0 0
    %350 = vmatpush2.bf16.msra.mxu0 0
    %351 = vmatprep.subr.bf16.mxu0 0
    %352 = vmatpush2.bf16.msra.mxu0 0
    %353 = vmatprep.subr.bf16.mxu0 0
    %354 = vmatpush2.bf16.msra.mxu0 0
    %355 = vmatprep.mubr.bf16.mxu0 0
    %356 = vmatmul.mubr.bf16.gmra.mxu0 %v213
    %v357 = vpop.f32.mrf.mxu0
    %v358 = vadd.f32 %v236, %v357
    %v359 = vpop.f32.mrf.mxu0
    %v360 = vadd.f32 %v240, %v359
    %v361 = vpop.f32.mrf.mxu0
    %v362 = vpop.f32.mrf.mxu0
    %363 = vdwg.mxu0
    %vm364 = vcmp.gt.f32.partialorder %v358, 0.0
    %vm365 = vcmp.gt.f32.partialorder %v360, 0.0
    %v366 = vmul.f32 %v358, 0.1
    %v367 = vmul.f32 %v360, 0.1
    %v368 = vsel %vm364, %v358, %v366
    %v369 = vsel %vm365, %v360, %v367
    %v370 = vpack.c.bf16 %v368, %v368
    %v371 = vpack.c.bf16 %v369, %v369
    %v372 = vld [vmem:[#allocation8] sm:$0xff]
    %v373 = vld [vmem:[#allocation8 + $0x8] sm:$0xff]
    %v374 = vld [vmem:[#allocation8 + $0x10] sm:$0xff]
    %v375 = vld [vmem:[#allocation8 + $0x18] sm:$0xff]
    %v376 = vld [vmem:[#allocation8 + $0x20] sm:$0xff]
    %v377 = vld [vmem:[#allocation8 + $0x28] sm:$0xff]
    %v378 = vld [vmem:[#allocation8 + $0x30] sm:$0xff]
    %v379 = vld [vmem:[#allocation8 + $0x38] sm:$0xff]
    %v380 = vld [vmem:[#allocation8 + $0x40] sm:$0xff]
    %v381 = vld [vmem:[#allocation8 + $0x48] sm:$0xff]
    %v382 = vld [vmem:[#allocation8 + $0x50] sm:$0xff]
    %v383 = vld [vmem:[#allocation8 + $0x58] sm:$0xff]
    %v384 = vld [vmem:[#allocation8 + $0x60] sm:$0xff]
    %v385 = vld [vmem:[#allocation8 + $0x68] sm:$0xff]
    %v386 = vld [vmem:[#allocation8 + $0x70] sm:$0xff]
    %v387 = vld [vmem:[#allocation8 + $0x78] sm:$0xff]
    %v388 = vld [vmem:[#allocation8 + $0x80] sm:$0xff]
    %v389 = vld [vmem:[#allocation8 + $0x88] sm:$0xff]
    %v390 = vld [vmem:[#allocation8 + $0x90] sm:$0xff]
    %v391 = vld [vmem:[#allocation8 + $0x98] sm:$0xff]
    %v392 = vld [vmem:[#allocation8 + $0xa0] sm:$0xff]
    %v393 = vld [vmem:[#allocation8 + $0xa8] sm:$0xff]
    %v394 = vld [vmem:[#allocation8 + $0xb0] sm:$0xff]
    %v395 = vld [vmem:[#allocation8 + $0xb8] sm:$0xff]
    %v396 = vld [vmem:[#allocation8 + $0xc0] sm:$0xff]
    %v397 = vld [vmem:[#allocation8 + $0xc8] sm:$0xff]
    %v398 = vld [vmem:[#allocation8 + $0xd0] sm:$0xff]
    %v399 = vld [vmem:[#allocation8 + $0xd8] sm:$0xff]
    %v400 = vld [vmem:[#allocation8 + $0xe0] sm:$0xff]
    %v401 = vld [vmem:[#allocation8 + $0xe8] sm:$0xff]
    %v402 = vld [vmem:[#allocation8 + $0xf0] sm:$0xff]
    %v403 = vld [vmem:[#allocation8 + $0xf8] sm:$0xff]
    %v404 = vld [vmem:[#allocation8 + $0x100] sm:$0xff]
    %v405 = vld [vmem:[#allocation8 + $0x108] sm:$0xff]
    %v406 = vld [vmem:[#allocation8 + $0x110] sm:$0xff]
    %v407 = vld [vmem:[#allocation8 + $0x118] sm:$0xff]
    %v408 = vld [vmem:[#allocation8 + $0x120] sm:$0xff]
    %v409 = vld [vmem:[#allocation8 + $0x128] sm:$0xff]
    %v410 = vld [vmem:[#allocation8 + $0x130] sm:$0xff]
    %v411 = vld [vmem:[#allocation8 + $0x138] sm:$0xff]
    %v412 = vld [vmem:[#allocation8 + $0x140] sm:$0xff]
    %v413 = vld [vmem:[#allocation8 + $0x148] sm:$0xff]
    %v414 = vld [vmem:[#allocation8 + $0x150] sm:$0xff]
    %v415 = vld [vmem:[#allocation8 + $0x158] sm:$0xff]
    %v416 = vld [vmem:[#allocation8 + $0x160] sm:$0xff]
    %v417 = vld [vmem:[#allocation8 + $0x168] sm:$0xff]
    %v418 = vld [vmem:[#allocation8 + $0x170] sm:$0xff]
    %v419 = vld [vmem:[#allocation8 + $0x178] sm:$0xff]
    %v420 = vld [vmem:[#allocation8 + $0x180] sm:$0xff]
    %v421 = vld [vmem:[#allocation8 + $0x188] sm:$0xff]
    %v422 = vld [vmem:[#allocation8 + $0x190] sm:$0xff]
    %v423 = vld [vmem:[#allocation8 + $0x198] sm:$0xff]
    %v424 = vld [vmem:[#allocation8 + $0x1a0] sm:$0xff]
    %v425 = vld [vmem:[#allocation8 + $0x1a8] sm:$0xff]
    %v426 = vld [vmem:[#allocation8 + $0x1b0] sm:$0xff]
    %v427 = vld [vmem:[#allocation8 + $0x1b8] sm:$0xff]
    %v428 = vld [vmem:[#allocation8 + $0x1c0] sm:$0xff]
    %v429 = vld [vmem:[#allocation8 + $0x1c8] sm:$0xff]
    %v430 = vld [vmem:[#allocation8 + $0x1d0] sm:$0xff]
    %v431 = vld [vmem:[#allocation8 + $0x1d8] sm:$0xff]
    %v432 = vld [vmem:[#allocation8 + $0x1e0] sm:$0xff]
    %v433 = vld [vmem:[#allocation8 + $0x1e8] sm:$0xff]
    %v434 = vld [vmem:[#allocation8 + $0x1f0] sm:$0xff]
    %v435 = vld [vmem:[#allocation8 + $0x1f8] sm:$0xff]
    %v436 = vld [vmem:[#allocation10] sm:$0xff]
    %v437 = vld [vmem:[#allocation10 + $0x8] sm:$0xff]
    %v438 = vld [vmem:[#allocation10 + $0x10] sm:$0xff]
    %v439 = vld [vmem:[#allocation10 + $0x18] sm:$0xff]
    %v440 = vld [vmem:[#allocation10 + $0x20] sm:$0xff]
    %v441 = vld [vmem:[#allocation10 + $0x28] sm:$0xff]
    %v442 = vld [vmem:[#allocation10 + $0x30] sm:$0xff]
    %v443 = vld [vmem:[#allocation10 + $0x38] sm:$0xff]
    %v444 = vld [vmem:[#allocation10 + $0x40] sm:$0xff]
    %v445 = vld [vmem:[#allocation10 + $0x48] sm:$0xff]
    %v446 = vld [vmem:[#allocation10 + $0x50] sm:$0xff]
    %v447 = vld [vmem:[#allocation10 + $0x58] sm:$0xff]
    %v448 = vld [vmem:[#allocation10 + $0x60] sm:$0xff]
    %v449 = vld [vmem:[#allocation10 + $0x68] sm:$0xff]
    %v450 = vld [vmem:[#allocation10 + $0x70] sm:$0xff]
    %v451 = vld [vmem:[#allocation10 + $0x78] sm:$0xff]
    %v452 = vld [vmem:[#allocation10 + $0x80] sm:$0xff]
    %v453 = vld [vmem:[#allocation10 + $0x88] sm:$0xff]
    %v454 = vld [vmem:[#allocation10 + $0x90] sm:$0xff]
    %v455 = vld [vmem:[#allocation10 + $0x98] sm:$0xff]
    %v456 = vld [vmem:[#allocation10 + $0xa0] sm:$0xff]
    %v457 = vld [vmem:[#allocation10 + $0xa8] sm:$0xff]
    %v458 = vld [vmem:[#allocation10 + $0xb0] sm:$0xff]
    %v459 = vld [vmem:[#allocation10 + $0xb8] sm:$0xff]
    %v460 = vld [vmem:[#allocation10 + $0xc0] sm:$0xff]
    %v461 = vld [vmem:[#allocation10 + $0xc8] sm:$0xff]
    %v462 = vld [vmem:[#allocation10 + $0xd0] sm:$0xff]
    %v463 = vld [vmem:[#allocation10 + $0xd8] sm:$0xff]
    %v464 = vld [vmem:[#allocation10 + $0xe0] sm:$0xff]
    %v465 = vld [vmem:[#allocation10 + $0xe8] sm:$0xff]
    %v466 = vld [vmem:[#allocation10 + $0xf0] sm:$0xff]
    %v467 = vld [vmem:[#allocation10 + $0xf8] sm:$0xff]
    %v500 = vunpack.c.l.b16 %v436
    %v501 = vunpack.c.h.b16 %v436
    %v502 = vunpack.c.l.b16 %v437
    %v503 = vunpack.c.h.b16 %v437
    %v504 = vunpack.c.l.b16 %v438
    %v505 = vunpack.c.h.b16 %v438
    %v506 = vunpack.c.l.b16 %v439
    %v507 = vunpack.c.h.b16 %v439
    %v508 = vunpack.c.l.b16 %v440
    %v509 = vunpack.c.h.b16 %v440
    %v510 = vunpack.c.l.b16 %v441
    %v511 = vunpack.c.h.b16 %v441
    %v512 = vunpack.c.l.b16 %v442
    %v513 = vunpack.c.h.b16 %v442
    %v514 = vunpack.c.l.b16 %v443
    %v515 = vunpack.c.h.b16 %v443
    %v516 = vunpack.c.l.b16 %v444
    %v517 = vunpack.c.h.b16 %v444
    %v518 = vunpack.c.l.b16 %v445
    %v519 = vunpack.c.h.b16 %v445
    %v520 = vunpack.c.l.b16 %v446
    %v521 = vunpack.c.h.b16 %v446
    %v522 = vunpack.c.l.b16 %v447
    %v523 = vunpack.c.h.b16 %v447
    %v524 = vunpack.c.l.b16 %v448
    %v525 = vunpack.c.h.b16 %v448
    %v526 = vunpack.c.l.b16 %v449
    %v527 = vunpack.c.h.b16 %v449
    %v528 = vunpack.c.l.b16 %v450
    %v529 = vunpack.c.h.b16 %v450
    %v530 = vunpack.c.l.b16 %v451
    %v531 = vunpack.c.h.b16 %v451
    %v532 = vunpack.c.l.b16 %v452
    %v533 = vunpack.c.h.b16 %v452
    %v534 = vunpack.c.l.b16 %v453
    %v535 = vunpack.c.h.b16 %v453
    %v536 = vunpack.c.l.b16 %v454
    %v537 = vunpack.c.h.b16 %v454
    %v538 = vunpack.c.l.b16 %v455
    %v539 = vunpack.c.h.b16 %v455
    %v540 = vunpack.c.l.b16 %v456
    %v541 = vunpack.c.h.b16 %v456
    %v542 = vunpack.c.l.b16 %v457
    %v543 = vunpack.c.h.b16 %v457
    %v544 = vunpack.c.l.b16 %v458
    %v545 = vunpack.c.h.b16 %v458
    %v546 = vunpack.c.l.b16 %v459
    %v547 = vunpack.c.h.b16 %v459
    %v548 = vunpack.c.l.b16 %v460
    %v549 = vunpack.c.h.b16 %v460
    %v550 = vunpack.c.l.b16 %v461
    %v551 = vunpack.c.h.b16 %v461
    %v552 = vunpack.c.l.b16 %v462
    %v553 = vunpack.c.h.b16 %v462
    %v554 = vunpack.c.l.b16 %v463
    %v555 = vunpack.c.h.b16 %v463
    %v556 = vunpack.c.l.b16 %v464
    %v557 = vunpack.c.h.b16 %v464
    %v558 = vunpack.c.l.b16 %v465
    %v559 = vunpack.c.h.b16 %v465
    %v560 = vunpack.c.l.b16 %v466
    %v561 = vunpack.c.h.b16 %v466
    %v562 = vunpack.c.l.b16 %v467
    %v563 = vunpack.c.h.b16 %v467
    %v564 = vpack.c.b16 %v504, %v500
    %v565 = vpack.c.b16 %v505, %v501
    %v566 = vpack.c.b16 %v506, %v502
    %v567 = vpack.c.b16 %v507, %v503
    %v568 = vpack.c.b16 %v512, %v508
    %v569 = vpack.c.b16 %v513, %v509
    %v570 = vpack.c.b16 %v514, %v510
    %v571 = vpack.c.b16 %v515, %v511
    %v572 = vpack.c.b16 %v520, %v516
    %v573 = vpack.c.b16 %v521, %v517
    %v574 = vpack.c.b16 %v522, %v518
    %v575 = vpack.c.b16 %v523, %v519
    %v576 = vpack.c.b16 %v528, %v524
    %v577 = vpack.c.b16 %v529, %v525
    %v578 = vpack.c.b16 %v530, %v526
    %v579 = vpack.c.b16 %v531, %v527
    %v580 = vpack.c.b16 %v536, %v532
    %v581 = vpack.c.b16 %v537, %v533
    %v582 = vpack.c.b16 %v538, %v534
    %v583 = vpack.c.b16 %v539, %v535
    %v584 = vpack.c.b16 %v544, %v540
    %v585 = vpack.c.b16 %v545, %v541
    %v586 = vpack.c.b16 %v546, %v542
    %v587 = vpack.c.b16 %v547, %v543
    %v588 = vpack.c.b16 %v552, %v548
    %v589 = vpack.c.b16 %v553, %v549
    %v590 = vpack.c.b16 %v554, %v550
    %v591 = vpack.c.b16 %v555, %v551
    %v592 = vpack.c.b16 %v560, %v556
    %v593 = vpack.c.b16 %v561, %v557
    %v594 = vpack.c.b16 %v562, %v558
    %v595 = vpack.c.b16 %v563, %v559
    %628 = vmatprep.subr.bf16.mxu0 %v593
    %629 = vmatpush1.bf16.msra.mxu0 %v592
    %630 = vmatprep.subr.bf16.mxu0 %v589
    %631 = vmatpush1.bf16.msra.mxu0 %v588
    %632 = vmatprep.subr.bf16.mxu0 %v585
    %633 = vmatpush1.bf16.msra.mxu0 %v584
    %634 = vmatprep.subr.bf16.mxu0 %v581
    %635 = vmatpush1.bf16.msra.mxu0 %v580
    %636 = vmatprep.subr.bf16.mxu0 %v577
    %637 = vmatpush1.bf16.msra.mxu0 %v576
    %638 = vmatprep.subr.bf16.mxu0 %v573
    %639 = vmatpush1.bf16.msra.mxu0 %v572
    %640 = vmatprep.subr.bf16.mxu0 %v569
    %641 = vmatpush1.bf16.msra.mxu0 %v568
    %642 = vmatprep.subr.bf16.mxu0 %v565
    %643 = vmatpush1.bf16.msra.mxu0 %v564
    %644 = vmatprep.subr.bf16.mxu0 0
    %645 = vmatpush2.bf16.msra.mxu0 0
    %646 = vmatprep.subr.bf16.mxu0 0
    %647 = vmatpush2.bf16.msra.mxu0 0
    %648 = vmatprep.subr.bf16.mxu0 0
    %649 = vmatpush2.bf16.msra.mxu0 0
    %650 = vmatprep.subr.bf16.mxu0 0
    %651 = vmatpush2.bf16.msra.mxu0 0
    %652 = vmatprep.subr.bf16.mxu0 0
    %653 = vmatpush2.bf16.msra.mxu0 0
    %654 = vmatprep.subr.bf16.mxu0 0
    %655 = vmatpush2.bf16.msra.mxu0 0
    %656 = vmatprep.subr.bf16.mxu0 0
    %657 = vmatpush2.bf16.msra.mxu0 0
    %658 = vmatprep.subr.bf16.mxu0 0
    %659 = vmatpush2.bf16.msra.mxu0 0
    %660 = vmatprep.mubr.bf16.mxu0 0
    %661 = vmatmul.mubr.bf16.gmra.mxu0 %v214
    %v662 = vpop.f32.mrf.mxu0
    %v663 = vadd.f32 0.0, %v662
    %v664 = vpop.f32.mrf.mxu0
    %v665 = vadd.f32 0.0, %v664
    %v666 = vpop.f32.mrf.mxu0
    %v667 = vpop.f32.mrf.mxu0
    %668 = vdwg.mxu0
    %669 = vmatprep.subr.bf16.mxu0 %v595
    %670 = vmatpush1.bf16.msra.mxu0 %v594
    %671 = vmatprep.subr.bf16.mxu0 %v591
    %672 = vmatpush1.bf16.msra.mxu0 %v590
    %673 = vmatprep.subr.bf16.mxu0 %v587
    %674 = vmatpush1.bf16.msra.mxu0 %v586
    %675 = vmatprep.subr.bf16.mxu0 %v583
    %676 = vmatpush1.bf16.msra.mxu0 %v582
    %677 = vmatprep.subr.bf16.mxu0 %v579
    %678 = vmatpush1.bf16.msra.mxu0 %v578
    %679 = vmatprep.subr.bf16.mxu0 %v575
    %680 = vmatpush1.bf16.msra.mxu0 %v574
    %681 = vmatprep.subr.bf16.mxu0 %v571
    %682 = vmatpush1.bf16.msra.mxu0 %v570
    %683 = vmatprep.subr.bf16.mxu0 %v567
    %684 = vmatpush1.bf16.msra.mxu0 %v566
    %685 = vmatprep.subr.bf16.mxu0 0
    %686 = vmatpush2.bf16.msra.mxu0 0
    %687 = vmatprep.subr.bf16.mxu0 0
    %688 = vmatpush2.bf16.msra.mxu0 0
    %689 = vmatprep.subr.bf16.mxu0 0
    %690 = vmatpush2.bf16.msra.mxu0 0
    %691 = vmatprep.subr.bf16.mxu0 0
    %692 = vmatpush2.bf16.msra.mxu0 0
    %693 = vmatprep.subr.bf16.mxu0 0
    %694 = vmatpush2.bf16.msra.mxu0 0
    %695 = vmatprep.subr.bf16.mxu0 0
    %696 = vmatpush2.bf16.msra.mxu0 0
    %697 = vmatprep.subr.bf16.mxu0 0
    %698 = vmatpush2.bf16.msra.mxu0 0
    %699 = vmatprep.subr.bf16.mxu0 0
    %700 = vmatpush2.bf16.msra.mxu0 0
    %701 = vmatprep.mubr.bf16.mxu0 0
    %702 = vmatmul.mubr.bf16.gmra.mxu0 %v214
    %v703 = vpop.f32.mrf.mxu0
    %v704 = vadd.f32 0.0, %v703
    %v705 = vpop.f32.mrf.mxu0
    %v706 = vadd.f32 0.0, %v705
    %v707 = vpop.f32.mrf.mxu0
    %v708 = vpop.f32.mrf.mxu0
    %709 = vdwg.mxu0
    %v774 = vunpack.c.l.b16 %v372
    %v775 = vunpack.c.h.b16 %v372
    %v776 = vunpack.c.l.b16 %v373
    %v777 = vunpack.c.h.b16 %v373
    %v778 = vunpack.c.l.b16 %v374
    %v779 = vunpack.c.h.b16 %v374
    %v780 = vunpack.c.l.b16 %v375
    %v781 = vunpack.c.h.b16 %v375
    %v782 = vunpack.c.l.b16 %v376
    %v783 = vunpack.c.h.b16 %v376
    %v784 = vunpack.c.l.b16 %v377
    %v785 = vunpack.c.h.b16 %v377
    %v786 = vunpack.c.l.b16 %v378
    %v787 = vunpack.c.h.b16 %v378
    %v788 = vunpack.c.l.b16 %v379
    %v789 = vunpack.c.h.b16 %v379
    %v790 = vunpack.c.l.b16 %v380
    %v791 = vunpack.c.h.b16 %v380
    %v792 = vunpack.c.l.b16 %v381
    %v793 = vunpack.c.h.b16 %v381
    %v794 = vunpack.c.l.b16 %v382
    %v795 = vunpack.c.h.b16 %v382
    %v796 = vunpack.c.l.b16 %v383
    %v797 = vunpack.c.h.b16 %v383
    %v798 = vunpack.c.l.b16 %v384
    %v799 = vunpack.c.h.b16 %v384
    %v800 = vunpack.c.l.b16 %v385
    %v801 = vunpack.c.h.b16 %v385
    %v802 = vunpack.c.l.b16 %v386
    %v803 = vunpack.c.h.b16 %v386
    %v804 = vunpack.c.l.b16 %v387
    %v805 = vunpack.c.h.b16 %v387
    %v806 = vunpack.c.l.b16 %v388
    %v807 = vunpack.c.h.b16 %v388
    %v808 = vunpack.c.l.b16 %v389
    %v809 = vunpack.c.h.b16 %v389
    %v810 = vunpack.c.l.b16 %v390
    %v811 = vunpack.c.h.b16 %v390
    %v812 = vunpack.c.l.b16 %v391
    %v813 = vunpack.c.h.b16 %v391
    %v814 = vunpack.c.l.b16 %v392
    %v815 = vunpack.c.h.b16 %v392
    %v816 = vunpack.c.l.b16 %v393
    %v817 = vunpack.c.h.b16 %v393
    %v818 = vunpack.c.l.b16 %v394
    %v819 = vunpack.c.h.b16 %v394
    %v820 = vunpack.c.l.b16 %v395
    %v821 = vunpack.c.h.b16 %v395
    %v822 = vunpack.c.l.b16 %v396
    %v823 = vunpack.c.h.b16 %v396
    %v824 = vunpack.c.l.b16 %v397
    %v825 = vunpack.c.h.b16 %v397
    %v826 = vunpack.c.l.b16 %v398
    %v827 = vunpack.c.h.b16 %v398
    %v828 = vunpack.c.l.b16 %v399
    %v829 = vunpack.c.h.b16 %v399
    %v830 = vunpack.c.l.b16 %v400
    %v831 = vunpack.c.h.b16 %v400
    %v832 = vunpack.c.l.b16 %v401
    %v833 = vunpack.c.h.b16 %v401
    %v834 = vunpack.c.l.b16 %v402
    %v835 = vunpack.c.h.b16 %v402
    %v836 = vunpack.c.l.b16 %v403
    %v837 = vunpack.c.h.b16 %v403
    %v838 = vunpack.c.l.b16 %v404
    %v839 = vunpack.c.h.b16 %v404
    %v840 = vunpack.c.l.b16 %v405
    %v841 = vunpack.c.h.b16 %v405
    %v842 = vunpack.c.l.b16 %v406
    %v843 = vunpack.c.h.b16 %v406
    %v844 = vunpack.c.l.b16 %v407
    %v845 = vunpack.c.h.b16 %v407
    %v846 = vunpack.c.l.b16 %v408
    %v847 = vunpack.c.h.b16 %v408
    %v848 = vunpack.c.l.b16 %v409
    %v849 = vunpack.c.h.b16 %v409
    %v850 = vunpack.c.l.b16 %v410
    %v851 = vunpack.c.h.b16 %v410
    %v852 = vunpack.c.l.b16 %v411
    %v853 = vunpack.c.h.b16 %v411
    %v854 = vunpack.c.l.b16 %v412
    %v855 = vunpack.c.h.b16 %v412
    %v856 = vunpack.c.l.b16 %v413
    %v857 = vunpack.c.h.b16 %v413
    %v858 = vunpack.c.l.b16 %v414
    %v859 = vunpack.c.h.b16 %v414
    %v860 = vunpack.c.l.b16 %v415
    %v861 = vunpack.c.h.b16 %v415
    %v862 = vunpack.c.l.b16 %v416
    %v863 = vunpack.c.h.b16 %v416
    %v864 = vunpack.c.l.b16 %v417
    %v865 = vunpack.c.h.b16 %v417
    %v866 = vunpack.c.l.b16 %v418
    %v867 = vunpack.c.h.b16 %v418
    %v868 = vunpack.c.l.b16 %v419
    %v869 = vunpack.c.h.b16 %v419
    %v870 = vunpack.c.l.b16 %v420
    %v871 = vunpack.c.h.b16 %v420
    %v872 = vunpack.c.l.b16 %v421
    %v873 = vunpack.c.h.b16 %v421
    %v874 = vunpack.c.l.b16 %v422
    %v875 = vunpack.c.h.b16 %v422
    %v876 = vunpack.c.l.b16 %v423
    %v877 = vunpack.c.h.b16 %v423
    %v878 = vunpack.c.l.b16 %v424
    %v879 = vunpack.c.h.b16 %v424
    %v880 = vunpack.c.l.b16 %v425
    %v881 = vunpack.c.h.b16 %v425
    %v882 = vunpack.c.l.b16 %v426
    %v883 = vunpack.c.h.b16 %v426
    %v884 = vunpack.c.l.b16 %v427
    %v885 = vunpack.c.h.b16 %v427
    %v886 = vunpack.c.l.b16 %v428
    %v887 = vunpack.c.h.b16 %v428
    %v888 = vunpack.c.l.b16 %v429
    %v889 = vunpack.c.h.b16 %v429
    %v890 = vunpack.c.l.b16 %v430
    %v891 = vunpack.c.h.b16 %v430
    %v892 = vunpack.c.l.b16 %v431
    %v893 = vunpack.c.h.b16 %v431
    %v894 = vunpack.c.l.b16 %v432
    %v895 = vunpack.c.h.b16 %v432
    %v896 = vunpack.c.l.b16 %v433
    %v897 = vunpack.c.h.b16 %v433
    %v898 = vunpack.c.l.b16 %v434
    %v899 = vunpack.c.h.b16 %v434
    %v900 = vunpack.c.l.b16 %v435
    %v901 = vunpack.c.h.b16 %v435
    %v902 = vpack.c.b16 %v778, %v774
    %v903 = vpack.c.b16 %v779, %v775
    %v904 = vpack.c.b16 %v780, %v776
    %v905 = vpack.c.b16 %v781, %v777
    %v906 = vpack.c.b16 %v786, %v782
    %v907 = vpack.c.b16 %v787, %v783
    %v908 = vpack.c.b16 %v788, %v784
    %v909 = vpack.c.b16 %v789, %v785
    %v910 = vpack.c.b16 %v794, %v790
    %v911 = vpack.c.b16 %v795, %v791
    %v912 = vpack.c.b16 %v796, %v792
    %v913 = vpack.c.b16 %v797, %v793
    %v914 = vpack.c.b16 %v802, %v798
    %v915 = vpack.c.b16 %v803, %v799
    %v916 = vpack.c.b16 %v804, %v800
    %v917 = vpack.c.b16 %v805, %v801
    %v918 = vpack.c.b16 %v810, %v806
    %v919 = vpack.c.b16 %v811, %v807
    %v920 = vpack.c.b16 %v812, %v808
    %v921 = vpack.c.b16 %v813, %v809
    %v922 = vpack.c.b16 %v818, %v814
    %v923 = vpack.c.b16 %v819, %v815
    %v924 = vpack.c.b16 %v820, %v816
    %v925 = vpack.c.b16 %v821, %v817
    %v926 = vpack.c.b16 %v826, %v822
    %v927 = vpack.c.b16 %v827, %v823
    %v928 = vpack.c.b16 %v828, %v824
    %v929 = vpack.c.b16 %v829, %v825
    %v930 = vpack.c.b16 %v834, %v830
    %v931 = vpack.c.b16 %v835, %v831
    %v932 = vpack.c.b16 %v836, %v832
    %v933 = vpack.c.b16 %v837, %v833
    %v934 = vpack.c.b16 %v842, %v838
    %v935 = vpack.c.b16 %v843, %v839
    %v936 = vpack.c.b16 %v844, %v840
    %v937 = vpack.c.b16 %v845, %v841
    %v938 = vpack.c.b16 %v850, %v846
    %v939 = vpack.c.b16 %v851, %v847
    %v940 = vpack.c.b16 %v852, %v848
    %v941 = vpack.c.b16 %v853, %v849
    %v942 = vpack.c.b16 %v858, %v854
    %v943 = vpack.c.b16 %v859, %v855
    %v944 = vpack.c.b16 %v860, %v856
    %v945 = vpack.c.b16 %v861, %v857
    %v946 = vpack.c.b16 %v866, %v862
    %v947 = vpack.c.b16 %v867, %v863
    %v948 = vpack.c.b16 %v868, %v864
    %v949 = vpack.c.b16 %v869, %v865
    %v950 = vpack.c.b16 %v874, %v870
    %v951 = vpack.c.b16 %v875, %v871
    %v952 = vpack.c.b16 %v876, %v872
    %v953 = vpack.c.b16 %v877, %v873
    %v954 = vpack.c.b16 %v882, %v878
    %v955 = vpack.c.b16 %v883, %v879
    %v956 = vpack.c.b16 %v884, %v880
    %v957 = vpack.c.b16 %v885, %v881
    %v958 = vpack.c.b16 %v890, %v886
    %v959 = vpack.c.b16 %v891, %v887
    %v960 = vpack.c.b16 %v892, %v888
    %v961 = vpack.c.b16 %v893, %v889
    %v962 = vpack.c.b16 %v898, %v894
    %v963 = vpack.c.b16 %v899, %v895
    %v964 = vpack.c.b16 %v900, %v896
    %v965 = vpack.c.b16 %v901, %v897
    %1030 = vmatprep.subr.bf16.mxu0 %v931
    %1031 = vmatpush1.bf16.msra.mxu0 %v930
    %1032 = vmatprep.subr.bf16.mxu0 %v927
    %1033 = vmatpush1.bf16.msra.mxu0 %v926
    %1034 = vmatprep.subr.bf16.mxu0 %v923
    %1035 = vmatpush1.bf16.msra.mxu0 %v922
    %1036 = vmatprep.subr.bf16.mxu0 %v919
    %1037 = vmatpush1.bf16.msra.mxu0 %v918
    %1038 = vmatprep.subr.bf16.mxu0 %v915
    %1039 = vmatpush1.bf16.msra.mxu0 %v914
    %1040 = vmatprep.subr.bf16.mxu0 %v911
    %1041 = vmatpush1.bf16.msra.mxu0 %v910
    %1042 = vmatprep.subr.bf16.mxu0 %v907
    %1043 = vmatpush1.bf16.msra.mxu0 %v906
    %1044 = vmatprep.subr.bf16.mxu0 %v903
    %1045 = vmatpush1.bf16.msra.mxu0 %v902
    %1046 = vmatprep.subr.bf16.mxu0 %v963
    %1047 = vmatpush2.bf16.msra.mxu0 %v962
    %1048 = vmatprep.subr.bf16.mxu0 %v959
    %1049 = vmatpush2.bf16.msra.mxu0 %v958
    %1050 = vmatprep.subr.bf16.mxu0 %v955
    %1051 = vmatpush2.bf16.msra.mxu0 %v954
    %1052 = vmatprep.subr.bf16.mxu0 %v951
    %1053 = vmatpush2.bf16.msra.mxu0 %v950
    %1054 = vmatprep.subr.bf16.mxu0 %v947
    %1055 = vmatpush2.bf16.msra.mxu0 %v946
    %1056 = vmatprep.subr.bf16.mxu0 %v943
    %1057 = vmatpush2.bf16.msra.mxu0 %v942
    %1058 = vmatprep.subr.bf16.mxu0 %v939
    %1059 = vmatpush2.bf16.msra.mxu0 %v938
    %1060 = vmatprep.subr.bf16.mxu0 %v935
    %1061 = vmatpush2.bf16.msra.mxu0 %v934
    %1062 = vmatprep.mubr.bf16.mxu0 %v371
    %1063 = vmatmul.mubr.bf16.gmra.mxu0 %v370
    %v1064 = vpop.f32.mrf.mxu0
    %v1065 = vadd.f32 %v663, %v1064
    %v1066 = vpop.f32.mrf.mxu0
    %v1067 = vadd.f32 %v665, %v1066
    %v1068 = vpop.f32.mrf.mxu0
    %v1069 = vpop.f32.mrf.mxu0
    %1070 = vdwg.mxu0
    %1071 = vmatprep.subr.bf16.mxu0 %v933
    %1072 = vmatpush1.bf16.msra.mxu0 %v932
    %1073 = vmatprep.subr.bf16.mxu0 %v929
    %1074 = vmatpush1.bf16.msra.mxu0 %v928
    %1075 = vmatprep.subr.bf16.mxu0 %v925
    %1076 = vmatpush1.bf16.msra.mxu0 %v924
    %1077 = vmatprep.subr.bf16.mxu0 %v921
    %1078 = vmatpush1.bf16.msra.mxu0 %v920
    %1079 = vmatprep.subr.bf16.mxu0 %v917
    %1080 = vmatpush1.bf16.msra.mxu0 %v916
    %1081 = vmatprep.subr.bf16.mxu0 %v913
    %1082 = vmatpush1.bf16.msra.mxu0 %v912
    %1083 = vmatprep.subr.bf16.mxu0 %v909
    %1084 = vmatpush1.bf16.msra.mxu0 %v908
    %1085 = vmatprep.subr.bf16.mxu0 %v905
    %1086 = vmatpush1.bf16.msra.mxu0 %v904
    %1087 = vmatprep.subr.bf16.mxu0 %v965
    %1088 = vmatpush2.bf16.msra.mxu0 %v964
    %1089 = vmatprep.subr.bf16.mxu0 %v961
    %1090 = vmatpush2.bf16.msra.mxu0 %v960
    %1091 = vmatprep.subr.bf16.mxu0 %v957
    %1092 = vmatpush2.bf16.msra.mxu0 %v956
    %1093 = vmatprep.subr.bf16.mxu0 %v953
    %1094 = vmatpush2.bf16.msra.mxu0 %v952
    %1095 = vmatprep.subr.bf16.mxu0 %v949
    %1096 = vmatpush2.bf16.msra.mxu0 %v948
    %1097 = vmatprep.subr.bf16.mxu0 %v945
    %1098 = vmatpush2.bf16.msra.mxu0 %v944
    %1099 = vmatprep.subr.bf16.mxu0 %v941
    %1100 = vmatpush2.bf16.msra.mxu0 %v940
    %1101 = vmatprep.subr.bf16.mxu0 %v937
    %1102 = vmatpush2.bf16.msra.mxu0 %v936
    %1103 = vmatprep.mubr.bf16.mxu0 %v371
    %1104 = vmatmul.mubr.bf16.gmra.mxu0 %v370
    %v1105 = vpop.f32.mrf.mxu0
    %v1106 = vadd.f32 %v704, %v1105
    %v1107 = vpop.f32.mrf.mxu0
    %v1108 = vadd.f32 %v706, %v1107
    %v1109 = vpop.f32.mrf.mxu0
    %v1110 = vpop.f32.mrf.mxu0
    %1111 = vdwg.mxu0
    %v1112 = vld [vmem:[%s7] sm:$0xf]
    %v1114 = vlaneseq
    %v1115 = vshrl.u32 %v1114, 7
    %v1116 = vsub.s32 0, %v1115
    %v1117 = vrot.slane %v1112, %v1116
    %v1118 = vlaneseq
    %v1119 = vshrl.u32 %v1118, 7
    %v1120 = vsub.s32 1, %v1119
    %v1121 = vrot.slane %v1112, %v1120
    %v1122 = vlaneseq
    %v1123 = vshrl.u32 %v1122, 7
    %v1124 = vsub.s32 2, %v1123
    %v1125 = vrot.slane %v1112, %v1124
    %v1126 = vlaneseq
    %v1127 = vshrl.u32 %v1126, 7
    %v1128 = vsub.s32 3, %v1127
    %v1129 = vrot.slane %v1112, %v1128
    %v1134 = vadd.f32 %v1065, %v1117
    %v1135 = vadd.f32 %v1067, %v1121
    %v1136 = vadd.f32 %v1106, %v1125
    %v1137 = vadd.f32 %v1108, %v1129
    %vm1138 = vcmp.gt.f32.partialorder %v1134, 0.0
    %vm1139 = vcmp.gt.f32.partialorder %v1135, 0.0
    %vm1140 = vcmp.gt.f32.partialorder %v1136, 0.0
    %vm1141 = vcmp.gt.f32.partialorder %v1137, 0.0
    %v1142 = vmul.f32 %v1134, 0.1
    %v1143 = vmul.f32 %v1135, 0.1
    %v1144 = vmul.f32 %v1136, 0.1
    %v1145 = vmul.f32 %v1137, 0.1
    %v1146 = vsel %vm1138, %v1134, %v1142
    %v1147 = vsel %vm1139, %v1135, %v1143
    %v1148 = vsel %vm1140, %v1136, %v1144
    %v1149 = vsel %vm1141, %v1137, %v1145
    %v1150 = vpack.c.bf16 %v1146, %v1146
    %v1151 = vpack.c.bf16 %v1147, %v1147
    %v1152 = vpack.c.bf16 %v1148, %v1148
    %v1153 = vpack.c.bf16 %v1149, %v1149
    %v1154 = vld [vmem:[#allocation11] sm:$0xff]
    %v1155 = vld [vmem:[#allocation11 + $0x8] sm:$0xff]
    %v1156 = vld [vmem:[#allocation11 + $0x10] sm:$0xff]
    %v1157 = vld [vmem:[#allocation11 + $0x18] sm:$0xff]
    %v1158 = vld [vmem:[#allocation11 + $0x20] sm:$0xff]
    %v1159 = vld [vmem:[#allocation11 + $0x28] sm:$0xff]
    %v1160 = vld [vmem:[#allocation11 + $0x30] sm:$0xff]
    %v1161 = vld [vmem:[#allocation11 + $0x38] sm:$0xff]
    %v1162 = vld [vmem:[#allocation11 + $0x40] sm:$0xff]
    %v1163 = vld [vmem:[#allocation11 + $0x48] sm:$0xff]
    %v1164 = vld [vmem:[#allocation11 + $0x50] sm:$0xff]
    %v1165 = vld [vmem:[#allocation11 + $0x58] sm:$0xff]
    %v1166 = vld [vmem:[#allocation11 + $0x60] sm:$0xff]
    %v1167 = vld [vmem:[#allocation11 + $0x68] sm:$0xff]
    %v1168 = vld [vmem:[#allocation11 + $0x70] sm:$0xff]
    %v1169 = vld [vmem:[#allocation11 + $0x78] sm:$0xff]
    %v1170 = vld [vmem:[#allocation11 + $0x80] sm:$0xff]
    %v1171 = vld [vmem:[#allocation11 + $0x88] sm:$0xff]
    %v1172 = vld [vmem:[#allocation11 + $0x90] sm:$0xff]
    %v1173 = vld [vmem:[#allocation11 + $0x98] sm:$0xff]
    %v1174 = vld [vmem:[#allocation11 + $0xa0] sm:$0xff]
    %v1175 = vld [vmem:[#allocation11 + $0xa8] sm:$0xff]
    %v1176 = vld [vmem:[#allocation11 + $0xb0] sm:$0xff]
    %v1177 = vld [vmem:[#allocation11 + $0xb8] sm:$0xff]
    %v1178 = vld [vmem:[#allocation11 + $0xc0] sm:$0xff]
    %v1179 = vld [vmem:[#allocation11 + $0xc8] sm:$0xff]
    %v1180 = vld [vmem:[#allocation11 + $0xd0] sm:$0xff]
    %v1181 = vld [vmem:[#allocation11 + $0xd8] sm:$0xff]
    %v1182 = vld [vmem:[#allocation11 + $0xe0] sm:$0xff]
    %v1183 = vld [vmem:[#allocation11 + $0xe8] sm:$0xff]
    %v1184 = vld [vmem:[#allocation11 + $0xf0] sm:$0xff]
    %v1185 = vld [vmem:[#allocation11 + $0xf8] sm:$0xff]
    %v1186 = vld [vmem:[#allocation11 + $0x100] sm:$0xff]
    %v1187 = vld [vmem:[#allocation11 + $0x108] sm:$0xff]
    %v1188 = vld [vmem:[#allocation11 + $0x110] sm:$0xff]
    %v1189 = vld [vmem:[#allocation11 + $0x118] sm:$0xff]
    %v1190 = vld [vmem:[#allocation11 + $0x120] sm:$0xff]
    %v1191 = vld [vmem:[#allocation11 + $0x128] sm:$0xff]
    %v1192 = vld [vmem:[#allocation11 + $0x130] sm:$0xff]
    %v1193 = vld [vmem:[#allocation11 + $0x138] sm:$0xff]
    %v1194 = vld [vmem:[#allocation11 + $0x140] sm:$0xff]
    %v1195 = vld [vmem:[#allocation11 + $0x148] sm:$0xff]
    %v1196 = vld [vmem:[#allocation11 + $0x150] sm:$0xff]
    %v1197 = vld [vmem:[#allocation11 + $0x158] sm:$0xff]
    %v1198 = vld [vmem:[#allocation11 + $0x160] sm:$0xff]
    %v1199 = vld [vmem:[#allocation11 + $0x168] sm:$0xff]
    %v1200 = vld [vmem:[#allocation11 + $0x170] sm:$0xff]
    %v1201 = vld [vmem:[#allocation11 + $0x178] sm:$0xff]
    %v1202 = vld [vmem:[#allocation11 + $0x180] sm:$0xff]
    %v1203 = vld [vmem:[#allocation11 + $0x188] sm:$0xff]
    %v1204 = vld [vmem:[#allocation11 + $0x190] sm:$0xff]
    %v1205 = vld [vmem:[#allocation11 + $0x198] sm:$0xff]
    %v1206 = vld [vmem:[#allocation11 + $0x1a0] sm:$0xff]
    %v1207 = vld [vmem:[#allocation11 + $0x1a8] sm:$0xff]
    %v1208 = vld [vmem:[#allocation11 + $0x1b0] sm:$0xff]
    %v1209 = vld [vmem:[#allocation11 + $0x1b8] sm:$0xff]
    %v1210 = vld [vmem:[#allocation11 + $0x1c0] sm:$0xff]
    %v1211 = vld [vmem:[#allocation11 + $0x1c8] sm:$0xff]
    %v1212 = vld [vmem:[#allocation11 + $0x1d0] sm:$0xff]
    %v1213 = vld [vmem:[#allocation11 + $0x1d8] sm:$0xff]
    %v1214 = vld [vmem:[#allocation11 + $0x1e0] sm:$0xff]
    %v1215 = vld [vmem:[#allocation11 + $0x1e8] sm:$0xff]
    %v1216 = vld [vmem:[#allocation11 + $0x1f0] sm:$0xff]
    %v1217 = vld [vmem:[#allocation11 + $0x1f8] sm:$0xff]
    %v1218 = vld [vmem:[%s9] sm:$0x3]
    %v1220 = vlaneseq
    %v1221 = vshrl.u32 %v1220, 7
    %v1222 = vsub.s32 0, %v1221
    %v1223 = vrot.slane %v1218, %v1222
    %v1224 = vlaneseq
    %v1225 = vshrl.u32 %v1224, 7
    %v1226 = vsub.s32 1, %v1225
    %v1227 = vrot.slane %v1218, %v1226
    %v1294 = vunpack.c.l.b16 %v1154
    %v1295 = vunpack.c.h.b16 %v1154
    %v1296 = vunpack.c.l.b16 %v1155
    %v1297 = vunpack.c.h.b16 %v1155
    %v1298 = vunpack.c.l.b16 %v1156
    %v1299 = vunpack.c.h.b16 %v1156
    %v1300 = vunpack.c.l.b16 %v1157
    %v1301 = vunpack.c.h.b16 %v1157
    %v1302 = vunpack.c.l.b16 %v1158
    %v1303 = vunpack.c.h.b16 %v1158
    %v1304 = vunpack.c.l.b16 %v1159
    %v1305 = vunpack.c.h.b16 %v1159
    %v1306 = vunpack.c.l.b16 %v1160
    %v1307 = vunpack.c.h.b16 %v1160
    %v1308 = vunpack.c.l.b16 %v1161
    %v1309 = vunpack.c.h.b16 %v1161
    %v1310 = vunpack.c.l.b16 %v1162
    %v1311 = vunpack.c.h.b16 %v1162
    %v1312 = vunpack.c.l.b16 %v1163
    %v1313 = vunpack.c.h.b16 %v1163
    %v1314 = vunpack.c.l.b16 %v1164
    %v1315 = vunpack.c.h.b16 %v1164
    %v1316 = vunpack.c.l.b16 %v1165
    %v1317 = vunpack.c.h.b16 %v1165
    %v1318 = vunpack.c.l.b16 %v1166
    %v1319 = vunpack.c.h.b16 %v1166
    %v1320 = vunpack.c.l.b16 %v1167
    %v1321 = vunpack.c.h.b16 %v1167
    %v1322 = vunpack.c.l.b16 %v1168
    %v1323 = vunpack.c.h.b16 %v1168
    %v1324 = vunpack.c.l.b16 %v1169
    %v1325 = vunpack.c.h.b16 %v1169
    %v1326 = vunpack.c.l.b16 %v1170
    %v1327 = vunpack.c.h.b16 %v1170
    %v1328 = vunpack.c.l.b16 %v1171
    %v1329 = vunpack.c.h.b16 %v1171
    %v1330 = vunpack.c.l.b16 %v1172
    %v1331 = vunpack.c.h.b16 %v1172
    %v1332 = vunpack.c.l.b16 %v1173
    %v1333 = vunpack.c.h.b16 %v1173
    %v1334 = vunpack.c.l.b16 %v1174
    %v1335 = vunpack.c.h.b16 %v1174
    %v1336 = vunpack.c.l.b16 %v1175
    %v1337 = vunpack.c.h.b16 %v1175
    %v1338 = vunpack.c.l.b16 %v1176
    %v1339 = vunpack.c.h.b16 %v1176
    %v1340 = vunpack.c.l.b16 %v1177
    %v1341 = vunpack.c.h.b16 %v1177
    %v1342 = vunpack.c.l.b16 %v1178
    %v1343 = vunpack.c.h.b16 %v1178
    %v1344 = vunpack.c.l.b16 %v1179
    %v1345 = vunpack.c.h.b16 %v1179
    %v1346 = vunpack.c.l.b16 %v1180
    %v1347 = vunpack.c.h.b16 %v1180
    %v1348 = vunpack.c.l.b16 %v1181
    %v1349 = vunpack.c.h.b16 %v1181
    %v1350 = vunpack.c.l.b16 %v1182
    %v1351 = vunpack.c.h.b16 %v1182
    %v1352 = vunpack.c.l.b16 %v1183
    %v1353 = vunpack.c.h.b16 %v1183
    %v1354 = vunpack.c.l.b16 %v1184
    %v1355 = vunpack.c.h.b16 %v1184
    %v1356 = vunpack.c.l.b16 %v1185
    %v1357 = vunpack.c.h.b16 %v1185
    %v1358 = vunpack.c.l.b16 %v1186
    %v1359 = vunpack.c.h.b16 %v1186
    %v1360 = vunpack.c.l.b16 %v1187
    %v1361 = vunpack.c.h.b16 %v1187
    %v1362 = vunpack.c.l.b16 %v1188
    %v1363 = vunpack.c.h.b16 %v1188
    %v1364 = vunpack.c.l.b16 %v1189
    %v1365 = vunpack.c.h.b16 %v1189
    %v1366 = vunpack.c.l.b16 %v1190
    %v1367 = vunpack.c.h.b16 %v1190
    %v1368 = vunpack.c.l.b16 %v1191
    %v1369 = vunpack.c.h.b16 %v1191
    %v1370 = vunpack.c.l.b16 %v1192
    %v1371 = vunpack.c.h.b16 %v1192
    %v1372 = vunpack.c.l.b16 %v1193
    %v1373 = vunpack.c.h.b16 %v1193
    %v1374 = vunpack.c.l.b16 %v1194
    %v1375 = vunpack.c.h.b16 %v1194
    %v1376 = vunpack.c.l.b16 %v1195
    %v1377 = vunpack.c.h.b16 %v1195
    %v1378 = vunpack.c.l.b16 %v1196
    %v1379 = vunpack.c.h.b16 %v1196
    %v1380 = vunpack.c.l.b16 %v1197
    %v1381 = vunpack.c.h.b16 %v1197
    %v1382 = vunpack.c.l.b16 %v1198
    %v1383 = vunpack.c.h.b16 %v1198
    %v1384 = vunpack.c.l.b16 %v1199
    %v1385 = vunpack.c.h.b16 %v1199
    %v1386 = vunpack.c.l.b16 %v1200
    %v1387 = vunpack.c.h.b16 %v1200
    %v1388 = vunpack.c.l.b16 %v1201
    %v1389 = vunpack.c.h.b16 %v1201
    %v1390 = vunpack.c.l.b16 %v1202
    %v1391 = vunpack.c.h.b16 %v1202
    %v1392 = vunpack.c.l.b16 %v1203
    %v1393 = vunpack.c.h.b16 %v1203
    %v1394 = vunpack.c.l.b16 %v1204
    %v1395 = vunpack.c.h.b16 %v1204
    %v1396 = vunpack.c.l.b16 %v1205
    %v1397 = vunpack.c.h.b16 %v1205
    %v1398 = vunpack.c.l.b16 %v1206
    %v1399 = vunpack.c.h.b16 %v1206
    %v1400 = vunpack.c.l.b16 %v1207
    %v1401 = vunpack.c.h.b16 %v1207
    %v1402 = vunpack.c.l.b16 %v1208
    %v1403 = vunpack.c.h.b16 %v1208
    %v1404 = vunpack.c.l.b16 %v1209
    %v1405 = vunpack.c.h.b16 %v1209
    %v1406 = vunpack.c.l.b16 %v1210
    %v1407 = vunpack.c.h.b16 %v1210
    %v1408 = vunpack.c.l.b16 %v1211
    %v1409 = vunpack.c.h.b16 %v1211
    %v1410 = vunpack.c.l.b16 %v1212
    %v1411 = vunpack.c.h.b16 %v1212
    %v1412 = vunpack.c.l.b16 %v1213
    %v1413 = vunpack.c.h.b16 %v1213
    %v1414 = vunpack.c.l.b16 %v1214
    %v1415 = vunpack.c.h.b16 %v1214
    %v1416 = vunpack.c.l.b16 %v1215
    %v1417 = vunpack.c.h.b16 %v1215
    %v1418 = vunpack.c.l.b16 %v1216
    %v1419 = vunpack.c.h.b16 %v1216
    %v1420 = vunpack.c.l.b16 %v1217
    %v1421 = vunpack.c.h.b16 %v1217
    %v1422 = vpack.c.b16 %v1296, %v1294
    %v1423 = vpack.c.b16 %v1297, %v1295
    %v1424 = vpack.c.b16 %v1300, %v1298
    %v1425 = vpack.c.b16 %v1301, %v1299
    %v1426 = vpack.c.b16 %v1304, %v1302
    %v1427 = vpack.c.b16 %v1305, %v1303
    %v1428 = vpack.c.b16 %v1308, %v1306
    %v1429 = vpack.c.b16 %v1309, %v1307
    %v1430 = vpack.c.b16 %v1312, %v1310
    %v1431 = vpack.c.b16 %v1313, %v1311
    %v1432 = vpack.c.b16 %v1316, %v1314
    %v1433 = vpack.c.b16 %v1317, %v1315
    %v1434 = vpack.c.b16 %v1320, %v1318
    %v1435 = vpack.c.b16 %v1321, %v1319
    %v1436 = vpack.c.b16 %v1324, %v1322
    %v1437 = vpack.c.b16 %v1325, %v1323
    %v1438 = vpack.c.b16 %v1328, %v1326
    %v1439 = vpack.c.b16 %v1329, %v1327
    %v1440 = vpack.c.b16 %v1332, %v1330
    %v1441 = vpack.c.b16 %v1333, %v1331
    %v1442 = vpack.c.b16 %v1336, %v1334
    %v1443 = vpack.c.b16 %v1337, %v1335
    %v1444 = vpack.c.b16 %v1340, %v1338
    %v1445 = vpack.c.b16 %v1341, %v1339
    %v1446 = vpack.c.b16 %v1344, %v1342
    %v1447 = vpack.c.b16 %v1345, %v1343
    %v1448 = vpack.c.b16 %v1348, %v1346
    %v1449 = vpack.c.b16 %v1349, %v1347
    %v1450 = vpack.c.b16 %v1352, %v1350
    %v1451 = vpack.c.b16 %v1353, %v1351
    %v1452 = vpack.c.b16 %v1356, %v1354
    %v1453 = vpack.c.b16 %v1357, %v1355
    %v1454 = vpack.c.b16 %v1360, %v1358
    %v1455 = vpack.c.b16 %v1361, %v1359
    %v1456 = vpack.c.b16 %v1364, %v1362
    %v1457 = vpack.c.b16 %v1365, %v1363
    %v1458 = vpack.c.b16 %v1368, %v1366
    %v1459 = vpack.c.b16 %v1369, %v1367
    %v1460 = vpack.c.b16 %v1372, %v1370
    %v1461 = vpack.c.b16 %v1373, %v1371
    %v1462 = vpack.c.b16 %v1376, %v1374
    %v1463 = vpack.c.b16 %v1377, %v1375
    %v1464 = vpack.c.b16 %v1380, %v1378
    %v1465 = vpack.c.b16 %v1381, %v1379
    %v1466 = vpack.c.b16 %v1384, %v1382
    %v1467 = vpack.c.b16 %v1385, %v1383
    %v1468 = vpack.c.b16 %v1388, %v1386
    %v1469 = vpack.c.b16 %v1389, %v1387
    %v1470 = vpack.c.b16 %v1392, %v1390
    %v1471 = vpack.c.b16 %v1393, %v1391
    %v1472 = vpack.c.b16 %v1396, %v1394
    %v1473 = vpack.c.b16 %v1397, %v1395
    %v1474 = vpack.c.b16 %v1400, %v1398
    %v1475 = vpack.c.b16 %v1401, %v1399
    %v1476 = vpack.c.b16 %v1404, %v1402
    %v1477 = vpack.c.b16 %v1405, %v1403
    %v1478 = vpack.c.b16 %v1408, %v1406
    %v1479 = vpack.c.b16 %v1409, %v1407
    %v1480 = vpack.c.b16 %v1412, %v1410
    %v1481 = vpack.c.b16 %v1413, %v1411
    %v1482 = vpack.c.b16 %v1416, %v1414
    %v1483 = vpack.c.b16 %v1417, %v1415
    %v1484 = vpack.c.b16 %v1420, %v1418
    %v1485 = vpack.c.b16 %v1421, %v1419
    %1550 = vmatprep.subr.bf16.mxu0 %v1437
    %1551 = vmatpush1.bf16.msra.mxu0 %v1436
    %1552 = vmatprep.subr.bf16.mxu0 %v1435
    %1553 = vmatpush1.bf16.msra.mxu0 %v1434
    %1554 = vmatprep.subr.bf16.mxu0 %v1433
    %1555 = vmatpush1.bf16.msra.mxu0 %v1432
    %1556 = vmatprep.subr.bf16.mxu0 %v1431
    %1557 = vmatpush1.bf16.msra.mxu0 %v1430
    %1558 = vmatprep.subr.bf16.mxu0 %v1429
    %1559 = vmatpush1.bf16.msra.mxu0 %v1428
    %1560 = vmatprep.subr.bf16.mxu0 %v1427
    %1561 = vmatpush1.bf16.msra.mxu0 %v1426
    %1562 = vmatprep.subr.bf16.mxu0 %v1425
    %1563 = vmatpush1.bf16.msra.mxu0 %v1424
    %1564 = vmatprep.subr.bf16.mxu0 %v1423
    %1565 = vmatpush1.bf16.msra.mxu0 %v1422
    %1566 = vmatprep.subr.bf16.mxu0 %v1453
    %1567 = vmatpush2.bf16.msra.mxu0 %v1452
    %1568 = vmatprep.subr.bf16.mxu0 %v1451
    %1569 = vmatpush2.bf16.msra.mxu0 %v1450
    %1570 = vmatprep.subr.bf16.mxu0 %v1449
    %1571 = vmatpush2.bf16.msra.mxu0 %v1448
    %1572 = vmatprep.subr.bf16.mxu0 %v1447
    %1573 = vmatpush2.bf16.msra.mxu0 %v1446
    %1574 = vmatprep.subr.bf16.mxu0 %v1445
    %1575 = vmatpush2.bf16.msra.mxu0 %v1444
    %1576 = vmatprep.subr.bf16.mxu0 %v1443
    %1577 = vmatpush2.bf16.msra.mxu0 %v1442
    %1578 = vmatprep.subr.bf16.mxu0 %v1441
    %1579 = vmatpush2.bf16.msra.mxu0 %v1440
    %1580 = vmatprep.subr.bf16.mxu0 %v1439
    %1581 = vmatpush2.bf16.msra.mxu0 %v1438
    %1582 = vmatprep.mubr.bf16.mxu0 %v1151
    %1583 = vmatmul.mubr.bf16.gmra.mxu0 %v1150
    %v1584 = vpop.f32.mrf.mxu0
    %v1585 = vadd.f32 %v1223, %v1584
    %v1586 = vpop.f32.mrf.mxu0
    %v1587 = vadd.f32 %v1227, %v1586
    %v1588 = vpop.f32.mrf.mxu0
    %v1589 = vpop.f32.mrf.mxu0
    %1590 = vdwg.mxu0
    %1591 = vmatprep.subr.bf16.mxu0 %v1469
    %1592 = vmatpush1.bf16.msra.mxu0 %v1468
    %1593 = vmatprep.subr.bf16.mxu0 %v1467
    %1594 = vmatpush1.bf16.msra.mxu0 %v1466
    %1595 = vmatprep.subr.bf16.mxu0 %v1465
    %1596 = vmatpush1.bf16.msra.mxu0 %v1464
    %1597 = vmatprep.subr.bf16.mxu0 %v1463
    %1598 = vmatpush1.bf16.msra.mxu0 %v1462
    %1599 = vmatprep.subr.bf16.mxu0 %v1461
    %1600 = vmatpush1.bf16.msra.mxu0 %v1460
    %1601 = vmatprep.subr.bf16.mxu0 %v1459
    %1602 = vmatpush1.bf16.msra.mxu0 %v1458
    %1603 = vmatprep.subr.bf16.mxu0 %v1457
    %1604 = vmatpush1.bf16.msra.mxu0 %v1456
    %1605 = vmatprep.subr.bf16.mxu0 %v1455
    %1606 = vmatpush1.bf16.msra.mxu0 %v1454
    %1607 = vmatprep.subr.bf16.mxu0 %v1485
    %1608 = vmatpush2.bf16.msra.mxu0 %v1484
    %1609 = vmatprep.subr.bf16.mxu0 %v1483
    %1610 = vmatpush2.bf16.msra.mxu0 %v1482
    %1611 = vmatprep.subr.bf16.mxu0 %v1481
    %1612 = vmatpush2.bf16.msra.mxu0 %v1480
    %1613 = vmatprep.subr.bf16.mxu0 %v1479
    %1614 = vmatpush2.bf16.msra.mxu0 %v1478
    %1615 = vmatprep.subr.bf16.mxu0 %v1477
    %1616 = vmatpush2.bf16.msra.mxu0 %v1476
    %1617 = vmatprep.subr.bf16.mxu0 %v1475
    %1618 = vmatpush2.bf16.msra.mxu0 %v1474
    %1619 = vmatprep.subr.bf16.mxu0 %v1473
    %1620 = vmatpush2.bf16.msra.mxu0 %v1472
    %1621 = vmatprep.subr.bf16.mxu0 %v1471
    %1622 = vmatpush2.bf16.msra.mxu0 %v1470
    %1623 = vmatprep.mubr.bf16.mxu0 %v1153
    %1624 = vmatmul.mubr.bf16.gmra.mxu0 %v1152
    %v1625 = vpop.f32.mrf.mxu0
    %v1626 = vadd.f32 %v1585, %v1625
    %v1627 = vpop.f32.mrf.mxu0
    %v1628 = vadd.f32 %v1587, %v1627
    %v1629 = vpop.f32.mrf.mxu0
    %v1630 = vpop.f32.mrf.mxu0
    %1631 = vdwg.mxu0
    %vm1632 = vcmp.gt.f32.partialorder %v1626, 0.0
    %vm1633 = vcmp.gt.f32.partialorder %v1628, 0.0
    %v1634 = vmul.f32 %v1626, 0.1
    %v1635 = vmul.f32 %v1628, 0.1
    %v1636 = vsel %vm1632, %v1626, %v1634
    %v1637 = vsel %vm1633, %v1628, %v1635
    %v1638 = vld [vmem:[%s10] sm:$0x3]
    %v1640 = vlaneseq
    %v1641 = vshrl.u32 %v1640, 7
    %v1642 = vsub.s32 0, %v1641
    %v1643 = vrot.slane %v1638, %v1642
    %v1644 = vlaneseq
    %v1645 = vshrl.u32 %v1644, 7
    %v1646 = vsub.s32 1, %v1645
    %v1647 = vrot.slane %v1638, %v1646
    %v1650 = vmul.f32 %v1636, %v1643
    %v1651 = vmul.f32 %v1637, %v1647
    %v1652 = vadd.f32 %v1650, %v1651
    %1653 = vadd.xlane.f32.xlu0 %v1652
    %v1654 = vpop.xlane.xlu0 %1653
    %v1655 = vld [vmem:[#allocation2] sm:$0x1]
    %v1657 = vlaneseq
    %v1658 = vshrl.u32 %v1657, 7
    %v1659 = vsub.s32 0, %v1658
    %v1660 = vrot.slane %v1655, %v1659
    %v1662 = vadd.f32 %v1654, %v1660
    %vm1663 = vcmask 7168
    %1664 = vst.msk [vmem:[%s12] sm:$0xff] %vm1663, %v1662
    // Predicated region
    $region74: #{tpu_custom_call.1} parent=1 // pred_check
      _
    $region75: #{tpu_custom_call.1} parent=1 // pred_check_branch
      %1666 = sbr.rel (0) target = $region77
    $region76: #{tpu_custom_call.1} parent=1 // pred_region
      _
    $region77: #{tpu_custom_call.1} parent=1 // pred_fallthru
      _
    // Predicated region
    $region78: #{tpu_custom_call.1} parent=1 // pred_check
      _
    $region79: #{tpu_custom_call.1} parent=1 // pred_check_branch
      %1668 = sbr.rel (0) target = $region81
    $region80: #{tpu_custom_call.1} parent=1 // pred_region
      _
    $region81: #{tpu_custom_call.1} parent=1 // pred_fallthru
      _
    %1669 = vsyncpa [#allocation4], 1
    %1670 = vsyncpa [#allocation6], 1
    %1671 = vsyncpa [#allocation9], 1
    %1672 = vsyncpa [#allocation12], 1

</llo_original>
